<compile_context>
chip_gen: v7x
topology: tpu7x:2x2x1
jax: 0.10.0
libtpu: 0.0.40
codegen_flags: <defaults>
</compile_context>

<pallas_src>
import functools

import numpy as np

import jax
import jax.numpy as jnp
from jax.experimental import pallas as pl
from jax.experimental.pallas import tpu as pltpu


def _round_up(x, m):
    return ((x + m - 1) // m) * m


# ---------------------------------------------------------------------------
# B-spline basis via Cox-de Boor recursion (knots are compile-time constants).
# Used only OUTSIDE the kernel: for the pure-JAX reference and for the
# per-segment polynomial precompute. Matches scipy BSpline.basis_element over
# full_knots[i:i+degree+2] with extrapolate=False + nan_to_num.
# ---------------------------------------------------------------------------
def _cox_de_boor_basis(x, full_knots, degree):
    nk = len(full_knots)
    basis = []
    for j in range(nk - 1):
        t0, t1 = full_knots[j], full_knots[j + 1]
        if t1 > t0:
            basis.append(jnp.where((x >= t0) & (x < t1), 1.0, 0.0).astype(x.dtype))
        else:
            basis.append(jnp.zeros_like(x))
    for k in range(1, degree + 1):
        nxt = []
        for j in range(nk - 1 - k):
            ti, tik = full_knots[j], full_knots[j + k]
            ti1, tik1 = full_knots[j + 1], full_knots[j + k + 1]
            term = jnp.zeros_like(x)
            if tik > ti:
                term = term + (x - ti) / (tik - ti) * basis[j]
            if tik1 > ti1:
                term = term + (tik1 - x) / (tik1 - ti1) * basis[j + 1]
            nxt.append(term)
        basis = nxt
    return basis  # length == num_basis


# ---------------------------------------------------------------------------
# Per-segment matrices M[s] (degree+1, NB) mapping spline coefficients to
# polynomial coefficients in u = (x - knots[s]) / seg_width ∈ [0, 1).
# Exact (the spline restricted to a segment IS a degree-d polynomial).
# ---------------------------------------------------------------------------
def _bspline_segment_poly_matrices(full_knots, degree, knots):
    d1 = degree + 1
    num_seg = len(knots) - 1
    nb = len(full_knots) - degree - 1
    M = np.zeros((num_seg, d1, nb), dtype=np.float64)
    us = (np.arange(d1, dtype=np.float64) + 0.5) / d1            # points in (0,1)
    V = np.vander(us, N=d1, increasing=True)                     # V[k, m] = us[k]^m
    for s in range(num_seg):
        a, b = float(knots[s]), float(knots[s + 1])
        xs = jnp.asarray(a + us * (b - a), jnp.float32)
        basis = _cox_de_boor_basis(xs, full_knots, degree)
        B = np.stack([np.asarray(v, np.float64) for v in basis], axis=-1)   # (d1, NB)
        M[s] = np.linalg.solve(V, B)
    return M


# ---------------------------------------------------------------------------
# Kernel: node embedding (layer 0) + ALL KANG layers, grid=(num_layers,).
# Node state (H, N_pad) is carried resident in the output VMEM block; every
# other operand has a constant index_map (loaded once, resident).
# ---------------------------------------------------------------------------
def _kang_layers_kernel(x_ref, lin_w_ref, lin_b_ref, g_ref, beta_ref,
                        src_sel_ref, dst_sel_ref, rel_mask_ref,
                        poly_ref, wbase_ref, attn_col_ref,
                        w_ih_ref, w_hh_ref, b_ih_ref, b_hh_ref,
                        h_state_ref, attn_out_ref,
                        *, hidden_dim, num_seg, degree, x_min, x_max, inv_w):
    layer = pl.program_id(0)
    d1 = degree + 1

    # ---- node embedding: ReLU(LayerNorm(W x + b)) in (H, N) layout.
    # Cheap relative to the layer body; computed unconditionally so no MXU op
    # sits inside the scf.if, stored into the carried state only at layer 0.
    y = jnp.dot(lin_w_ref[...], x_ref[...],
                preferred_element_type=jnp.float32) + lin_b_ref[...]   # (H, N)
    mean = jnp.mean(y, axis=0, keepdims=True)
    var = jnp.mean((y - mean) ** 2, axis=0, keepdims=True)             # biased, like torch
    ln = (y - mean) * jax.lax.rsqrt(var + 1e-5) * g_ref[...] + beta_ref[...]
    h0 = jnp.maximum(ln, 0.0)

    @pl.when(layer == 0)
    def _():
        h_state_ref[...] = h0

    h_t = h_state_ref[...]                                             # (H, N) f32

    # ---- gather h[src]: native bf16 MXU matmul against exact 0/1 selection.
    h_src_t = jnp.dot(h_t.astype(jnp.bfloat16), src_sel_ref[...],
                      preferred_element_type=jnp.float32)              # (H, E)

    # ---- KAN edge function: SiLU base + piecewise-cubic spline (Horner).
    base_t = h_src_t * jax.nn.sigmoid(h_src_t)                         # SiLU

    t = (h_src_t - x_min) * inv_w                                      # segment coord
    segf = jnp.clip(jnp.floor(t), 0.0, float(num_seg - 1))
    u = t - segf                                                       # local u in [0,1)
    in_range = (h_src_t >= x_min) & (h_src_t < x_max)
    seg_is = [segf == float(s) for s in range(num_seg - 1)]

    def coef(k):
        c = poly_ref[pl.ds((num_seg - 1) * d1 + k, 1), :]              # (1, E)
        for s in range(num_seg - 2, -1, -1):
            c = jnp.where(seg_is[s], poly_ref[pl.ds(s * d1 + k, 1), :], c)
        return c

    spline_t = coef(degree)
    for k in range(degree - 1, -1, -1):
        spline_t = spline_t * u + coef(k)
    spline_t = jnp.where(in_range, spline_t, 0.0)                      # (H, E)

    # spline coeffs were pre-scaled by w_spline outside the kernel.
    transformed_t = wbase_ref[...] * base_t + spline_t                 # (H, E)

    # ---- attention logits via sublane (XLU) reduction, not a 1-row MXU dot.
    logits = jnp.sum(transformed_t * attn_col_ref[...],
                     axis=0, keepdims=True)                            # (1, E)

    # ---- per-relation masked softmax with a single (1,E) exp.
    mask = rel_mask_ref[...]                                           # (R, E) f32 0/1
    neg_big = jnp.float32(-1e30)
    m_r = jnp.max(jnp.where(mask > 0.0, logits, neg_big),
                  axis=-1, keepdims=True)                              # (R, 1)
    m_e = jnp.sum(mask * m_r, axis=0, keepdims=True)                   # (1, E)
    exp_e = jnp.exp(logits - m_e)                                      # (1, E)
    d_r = jnp.sum(mask * exp_e, axis=-1, keepdims=True)                # (R, 1)
    d_e = jnp.sum(mask * d_r, axis=0, keepdims=True)                   # (1, E)
    has_edges = d_e > 0.0
    inv = pl.reciprocal(jnp.where(has_edges, d_e, 1.0), approx=True)
    attn = jnp.where(has_edges, exp_e * inv, 0.0)                      # (1, E)

    # ---- scatter-add of messages: ONE fused bf16 matmul (attention folded in).
    weighted_t = transformed_t * attn                                  # (H, E)
    messages_t = jnp.dot(weighted_t.astype(jnp.bfloat16), dst_sel_ref[...],
                         preferred_element_type=jnp.float32)           # (H, N)

    # ---- GRUCell, gate-concatenated (2 dots instead of 6).
    gi = jnp.dot(w_ih_ref[...], messages_t,
                 preferred_element_type=jnp.float32) + b_ih_ref[...]   # (3H, N)
    gh = jnp.dot(w_hh_ref[...], h_t,
                 preferred_element_type=jnp.float32) + b_hh_ref[...]   # (3H, N)
    hd = hidden_dim
    r_g = jax.nn.sigmoid(gi[0:hd] + gh[0:hd])
    z_g = jax.nn.sigmoid(gi[hd:2 * hd] + gh[hd:2 * hd])
    n_g = jnp.tanh(gi[2 * hd:3 * hd] + r_g * gh[2 * hd:3 * hd])

    h_state_ref[...] = (1.0 - z_g) * n_g + z_g * h_t                   # carried state
    attn_out_ref[0] = attn                                             # lane-dense (1, E)


def kang_layers(x_t, lin_w, lin_b, gamma, beta, src_sel, dst_sel, rel_mask,
                poly, wbase_e, attn_col, w_ih, w_hh, b_ih, b_hh,
                *, num_layers, hidden_dim, num_seg, degree, x_min, x_max, inv_w):
    n_pad = x_t.shape[1]
    e_pad = src_sel.shape[1]

    kernel = functools.partial(
        _kang_layers_kernel, hidden_dim=hidden_dim, num_seg=num_seg,
        degree=degree, x_min=x_min, x_max=x_max, inv_w=inv_w)

    inputs = (x_t, lin_w, lin_b, gamma, beta, src_sel, dst_sel, rel_mask,
              poly, wbase_e, attn_col, w_ih, w_hh, b_ih, b_hh)
    # Constant index_maps -> every operand is DMA'd into VMEM once and stays
    # resident for all num_layers grid steps.
    # TODO(synk): on v7x mark these pipeline_mode=pl.Buffered(1) so the
    #             never-changing blocks are not double-buffered.
    in_specs = [pl.BlockSpec(a.shape, lambda l: (0, 0)) for a in inputs]

    return pl.pallas_call(
        kernel,
        grid=(num_layers,),
        out_shape=(jax.ShapeDtypeStruct((hidden_dim, n_pad), jnp.float32),
                   jax.ShapeDtypeStruct((num_layers, 1, e_pad), jnp.float32)),
        in_specs=in_specs,
        out_specs=(pl.BlockSpec((hidden_dim, n_pad), lambda l: (0, 0)),      # carried h
                   pl.BlockSpec((1, 1, e_pad), lambda l: (l, 0, 0))),        # per-layer attn
        compiler_params=pltpu.CompilerParams(
            dimension_semantics=("arbitrary",),          # layers are sequential
            vmem_limit_bytes=32 * 1024 * 1024),
    )(*inputs)


# ---------------------------------------------------------------------------
def kang_forward(x, src, dst, edge_type, params, *, num_layers, num_nodes,
                 num_relations, full_knots, degree):
    n = num_nodes
    e = src.shape[0]
    f = x.shape[1]
    hdim = params["lin_w"].shape[0]
    d1 = degree + 1

    n_pad = _round_up(max(n, 1), 128)
    e_pad = _round_up(max(e, 1), 128)

    # Node features in feature-major layout, node-padded with zero columns.
    x_t = jnp.zeros((f, n_pad), jnp.float32).at[:, :n].set(x.T)

    # Pad edge arrays with out-of-range ids -> all-zero one-hot rows/columns.
    src_p = jnp.full((e_pad,), n_pad, jnp.int32).at[:e].set(src.astype(jnp.int32))
    dst_p = jnp.full((e_pad,), n_pad, jnp.int32).at[:e].set(dst.astype(jnp.int32))
    et_p = jnp.full((e_pad,), num_relations, jnp.int32).at[:e].set(
        edge_type.astype(jnp.int32))

    # 0/1 selection matrices (bf16 is exact for 0/1), lane-dense padded shapes.
    src_sel = jax.nn.one_hot(src_p, n_pad, dtype=jnp.bfloat16).T         # (N_pad, E_pad)
    dst_sel = jax.nn.one_hot(dst_p, n_pad, dtype=jnp.bfloat16)           # (E_pad, N_pad)
    # rel_mask is tiny (R rows); keep f32 so the softmax needs no in-kernel cast.
    rel_mask = jax.nn.one_hot(et_p, num_relations, dtype=jnp.float32).T  # (R, E_pad)

    # Piecewise-cubic polynomial coefficients in u ∈ [0,1) per segment,
    # pre-scaled by w_spline, gathered per edge -> (num_seg*(d+1), E_pad).
    knots = np.asarray(full_knots[degree:len(full_knots) - degree], np.float64)
    num_seg = len(knots) - 1
    seg_w = float(knots[1] - knots[0])
    M = _bspline_segment_poly_matrices(full_knots, degree, knots)        # (S, d1, NB)
    p_rel = jnp.einsum("skb,rb->rsk", jnp.asarray(M, jnp.float32),
                       params["spline_coeffs"])                          # (R, S, d1)
    p_rel = p_rel * params["w_spline"][:, None, None]
    p_rel_ext = jnp.concatenate(
        [p_rel, jnp.zeros((1, num_seg, d1), jnp.float32)], axis=0)       # pad relation
    p_edge = p_rel_ext[et_p]                                             # (E_pad, S, d1)
    poly = p_edge.transpose(1, 2, 0).reshape(num_seg * d1, e_pad)        # (S*d1, E_pad)

    wb_ext = jnp.concatenate([params["w_base"], jnp.zeros((1,), jnp.float32)])
    wbase_e = wb_ext[et_p].reshape(1, e_pad)                             # (1, E_pad)

    # Column/row layouts for the small parameters (done once, outside the grid).
    lin_b_col = params["lin_b"].reshape(hdim, 1)
    gamma_col = params["ln_gamma"].reshape(hdim, 1)
    beta_col = params["ln_beta"].reshape(hdim, 1)
    attn_col = params["attention"].reshape(hdim, 1)
    b_ih_col = params["b_ih"].reshape(3 * hdim, 1)
    b_hh_col = params["b_hh"].reshape(3 * hdim, 1)

    h_t_out, attn_all = kang_layers(
        x_t, params["lin_w"], lin_b_col, gamma_col, beta_col,
        src_sel, dst_sel, rel_mask, poly, wbase_e, attn_col,
        params["w_ih"], params["w_hh"], b_ih_col, b_hh_col,
        num_layers=num_layers, hidden_dim=hdim, num_seg=num_seg, degree=degree,
        x_min=float(knots[0]), x_max=float(knots[-1]), inv_w=1.0 / seg_w)

    h_out = h_t_out[:, :n].T                                             # (N, H)
    attn_all = attn_all.reshape(num_layers, e_pad)[:, :e]
    return h_out, [attn_all[l] for l in range(num_layers)]


# ---------------------------------------------------------------------------
# Pure-JAX reference mirroring the PyTorch module (for correctness check).
# ---------------------------------------------------------------------------
def _kang_reference(x, src, dst, edge_type, params, *, num_layers, num_relations,
                    full_knots, degree):
    y = x @ params["lin_w"].T + params["lin_b"]
    mean = y.mean(axis=-1, keepdims=True)
    var = ((y - mean) ** 2).mean(axis=-1, keepdims=True)
    h = (y - mean) / jnp.sqrt(var + 1e-5) * params["ln_gamma"] + params["ln_beta"]
    h = jnp.maximum(h, 0.0)

    hdim = h.shape[1]
    attn_layers = []
    for _ in range(num_layers):
        h_src = h[src]
        base = h_src * jax.nn.sigmoid(h_src)
        basis = jnp.stack(_cox_de_boor_basis(h_src, full_knots, degree), axis=-1)
        coeffs_e = params["spline_coeffs"][edge_type]
        spline = jnp.einsum("ehb,eb->eh", basis, coeffs_e)
        transformed = (params["w_base"][edge_type][:, None] * base
                       + params["w_spline"][edge_type][:, None] * spline)
        logits = (transformed * params["attention"]).sum(axis=-1)

        attn = jnp.zeros_like(logits)
        messages = jnp.zeros_like(h)
        for r in range(num_relations):
            mask = edge_type == r
            a = jax.nn.softmax(jnp.where(mask, logits, -jnp.inf))
            a = jnp.where(mask, a, 0.0)
            attn = attn + a
            messages = messages.at[dst].add(transformed * a[:, None])
        attn_layers.append(attn)

        gi = messages @ params["w_ih"].T + params["b_ih"]
        gh = h @ params["w_hh"].T + params["b_hh"]
        r_g = jax.nn.sigmoid(gi[:, :hdim] + gh[:, :hdim])
        z_g = jax.nn.sigmoid(gi[:, hdim:2 * hdim] + gh[:, hdim:2 * hdim])
        n_g = jnp.tanh(gi[:, 2 * hdim:] + r_g * gh[:, 2 * hdim:])
        h = (1.0 - z_g) * n_g + z_g * h
    return h, attn_layers


if __name__ == "__main__":
    N, F, H = 8, 4, 16            # nodes, node features, hidden_dim
    R, E, L = 3, 12, 2            # relations, edges, num_layers
    GRID_SIZE, DEGREE = 5, 3      # KAN spline grid / degree (reference omits them)
    NB = GRID_SIZE + DEGREE - 1   # number of B-spline basis functions

    knots = [(-5.0 + 10.0 * i / (GRID_SIZE - 1)) for i in range(GRID_SIZE)]
    full_knots = tuple([-5.0] * DEGREE + knots + [5.0] * DEGREE)

    key = jax.random.PRNGKey(0)
    ks = jax.random.split(key, 12)

    x = jax.random.normal(ks[0], (N, F), jnp.float32)
    src = jax.random.randint(ks[1], (E,), 0, N)
    dst = jax.random.randint(ks[2], (E,), 0, N)
    edge_type = jnp.arange(E, dtype=jnp.int32) % R     # every relation has edges

    params = {
        "lin_w": jax.random.normal(ks[3], (H, F), jnp.float32) * 0.3,
        "lin_b": jax.random.normal(ks[4], (H,), jnp.float32) * 0.1,
        "ln_gamma": jnp.ones((H,), jnp.float32),
        "ln_beta": jnp.zeros((H,), jnp.float32),
        "spline_coeffs": jax.random.normal(ks[5], (R, NB), jnp.float32) * 0.1,
        "w_base": jnp.ones((R,), jnp.float32),
        "w_spline": jnp.ones((R,), jnp.float32),
        "attention": jax.random.normal(ks[6], (H,), jnp.float32),
        "w_ih": jax.random.normal(ks[7], (3 * H, H), jnp.float32) * 0.2,
        "w_hh": jax.random.normal(ks[8], (3 * H, H), jnp.float32) * 0.2,
        "b_ih": jax.random.normal(ks[9], (3 * H,), jnp.float32) * 0.1,
        "b_hh": jax.random.normal(ks[10], (3 * H,), jnp.float32) * 0.1,
    }

    h_out, attn_list = kang_forward(x, src, dst, edge_type, params,
                                    num_layers=L, num_nodes=N, num_relations=R,
                                    full_knots=full_knots, degree=DEGREE)
    h_out = jax.block_until_ready(h_out)
    attn_list = [jax.block_until_ready(a) for a in attn_list]

    assert h_out.shape == (N, H)
    assert len(attn_list) == L and all(a.shape == (E,) for a in attn_list)
    assert bool(jnp.all(jnp.isfinite(h_out)))
    assert all(bool(jnp.all(jnp.isfinite(a))) for a in attn_list)

    # Correctness vs pure-JAX reference. Tolerance budget: bf16 MXU
    # gather/scatter (~0.2% per element, compounding over 2 GRU layers),
    # approx-reciprocal softmax division (~1e-3) and the exact-but-refit
    # piecewise-polynomial spline (~1e-6).
    h_ref, attn_ref = _kang_reference(x, src, dst, edge_type, params,
                                      num_layers=L, num_relations=R,
                                      full_knots=full_knots, degree=DEGREE)
    assert bool(jnp.allclose(h_out, h_ref, rtol=5e-2, atol=5e-2))
    for a, ar in zip(attn_list, attn_ref):
        assert bool(jnp.allclose(a, ar, rtol=5e-2, atol=5e-2))

    print("KERNEL_OK")
</pallas_src>

<mosaic_0001>
module attributes {stable_mosaic.version = 11 : i64} {
  func.func @_kang_layers_kernel(%arg0: i32, %arg1: memref<4x128xf32, #tpu.memory_space<vmem>>, %arg2: memref<16x4xf32, #tpu.memory_space<vmem>>, %arg3: memref<16x1xf32, #tpu.memory_space<vmem>>, %arg4: memref<16x1xf32, #tpu.memory_space<vmem>>, %arg5: memref<16x1xf32, #tpu.memory_space<vmem>>, %arg6: memref<128x128xbf16, #tpu.memory_space<vmem>>, %arg7: memref<128x128xbf16, #tpu.memory_space<vmem>>, %arg8: memref<3x128xf32, #tpu.memory_space<vmem>>, %arg9: memref<16x128xf32, #tpu.memory_space<vmem>>, %arg10: memref<1x128xf32, #tpu.memory_space<vmem>>, %arg11: memref<16x1xf32, #tpu.memory_space<vmem>>, %arg12: memref<48x16xf32, #tpu.memory_space<vmem>>, %arg13: memref<48x16xf32, #tpu.memory_space<vmem>>, %arg14: memref<48x1xf32, #tpu.memory_space<vmem>>, %arg15: memref<48x1xf32, #tpu.memory_space<vmem>>, %arg16: memref<16x128xf32, #tpu.memory_space<vmem>>, %arg17: memref<1x1x128xf32, #tpu.memory_space<vmem>>) attributes {dimension_semantics = [#tpu.dimension_semantics<arbitrary>], iteration_bounds = array<i64: 2>, scalar_prefetch = 0 : i64, scratch_operands = 0 : i64, tpu.core_type = #tpu.core_type<tc>, window_params = [{pipeline_mode = #tpu.pipeline_mode<synchronous>, transform_indices = @transform_0, window_bounds = array<i64: 4, 128>}, {pipeline_mode = #tpu.pipeline_mode<synchronous>, transform_indices = @transform_1, window_bounds = array<i64: 16, 4>}, {pipeline_mode = #tpu.pipeline_mode<synchronous>, transform_indices = @transform_2, window_bounds = array<i64: 16, 1>}, {pipeline_mode = #tpu.pipeline_mode<synchronous>, transform_indices = @transform_3, window_bounds = array<i64: 16, 1>}, {pipeline_mode = #tpu.pipeline_mode<synchronous>, transform_indices = @transform_4, window_bounds = array<i64: 16, 1>}, {pipeline_mode = #tpu.pipeline_mode<synchronous>, transform_indices = @transform_5, window_bounds = array<i64: 128, 128>}, {pipeline_mode = #tpu.pipeline_mode<synchronous>, transform_indices = @transform_6, window_bounds = array<i64: 128, 128>}, {pipeline_mode = #tpu.pipeline_mode<synchronous>, transform_indices = @transform_7, window_bounds = array<i64: 3, 128>}, {pipeline_mode = #tpu.pipeline_mode<synchronous>, transform_indices = @transform_8, window_bounds = array<i64: 16, 128>}, {pipeline_mode = #tpu.pipeline_mode<synchronous>, transform_indices = @transform_9, window_bounds = array<i64: 1, 128>}, {pipeline_mode = #tpu.pipeline_mode<synchronous>, transform_indices = @transform_10, window_bounds = array<i64: 16, 1>}, {pipeline_mode = #tpu.pipeline_mode<synchronous>, transform_indices = @transform_11, window_bounds = array<i64: 48, 16>}, {pipeline_mode = #tpu.pipeline_mode<synchronous>, transform_indices = @transform_12, window_bounds = array<i64: 48, 16>}, {pipeline_mode = #tpu.pipeline_mode<synchronous>, transform_indices = @transform_13, window_bounds = array<i64: 48, 1>}, {pipeline_mode = #tpu.pipeline_mode<synchronous>, transform_indices = @transform_14, window_bounds = array<i64: 48, 1>}, {pipeline_mode = #tpu.pipeline_mode<synchronous>, transform_indices = @transform_15, window_bounds = array<i64: 16, 128>}, {transform_indices = @transform_16, window_bounds = array<i64: 1, 1, 128>}]} {
    %c0 = arith.constant 0 : index
    %c0_0 = arith.constant 0 : index
    %0 = vector.load %arg2[%c0, %c0_0] : memref<16x4xf32, #tpu.memory_space<vmem>>, vector<16x4xf32>
    %c0_1 = arith.constant 0 : index
    %c0_2 = arith.constant 0 : index
    %1 = vector.load %arg1[%c0_1, %c0_2] : memref<4x128xf32, #tpu.memory_space<vmem>>, vector<4x128xf32>
    %cst = arith.constant dense<0.000000e+00> : vector<16x128xf32>
    %2 = tpu.matmul %0, %1, %cst {dimension_numbers = #tpu.dot_dimension_numbers<[1], [0], [0], [1], [0, 0, 1, 1], [], []>} : vector<16x4xf32>, vector<4x128xf32>, vector<16x128xf32> -> vector<16x128xf32>
    %c0_3 = arith.constant 0 : index
    %c0_4 = arith.constant 0 : index
    %3 = vector.load %arg3[%c0_3, %c0_4] : memref<16x1xf32, #tpu.memory_space<vmem>>, vector<16x1xf32>
    %4 = vector.broadcast %3 : vector<16x1xf32> to vector<16x128xf32>
    %5 = arith.addf %2, %4 : vector<16x128xf32>
    %cst_5 = arith.constant dense<0.000000e+00> : vector<128xf32>
    %6 = vector.multi_reduction <add>, %5, %cst_5 [0] : vector<16x128xf32> to vector<128xf32>
    %7 = vector.shape_cast %6 : vector<128xf32> to vector<1x128xf32>
    %cst_6 = arith.constant 1.600000e+01 : f32
    %8 = vector.broadcast %cst_6 : f32 to vector<1x128xf32>
    %9 = arith.divf %7, %8 : vector<1x128xf32>
    %10 = vector.broadcast %9 : vector<1x128xf32> to vector<16x128xf32>
    %11 = arith.subf %5, %10 : vector<16x128xf32>
    %12 = arith.mulf %11, %11 : vector<16x128xf32>
    %cst_7 = arith.constant dense<0.000000e+00> : vector<128xf32>
    %13 = vector.multi_reduction <add>, %12, %cst_7 [0] : vector<16x128xf32> to vector<128xf32>
    %14 = vector.shape_cast %13 : vector<128xf32> to vector<1x128xf32>
    %cst_8 = arith.constant 1.600000e+01 : f32
    %15 = vector.broadcast %cst_8 : f32 to vector<1x128xf32>
    %16 = arith.divf %14, %15 : vector<1x128xf32>
    %17 = vector.broadcast %9 : vector<1x128xf32> to vector<16x128xf32>
    %18 = arith.subf %5, %17 : vector<16x128xf32>
    %cst_9 = arith.constant 9.99999974E-6 : f32
    %19 = vector.broadcast %cst_9 : f32 to vector<1x128xf32>
    %20 = arith.addf %16, %19 : vector<1x128xf32>
    %21 = math.rsqrt %20 : vector<1x128xf32>
    %22 = vector.broadcast %21 : vector<1x128xf32> to vector<16x128xf32>
    %23 = arith.mulf %18, %22 : vector<16x128xf32>
    %c0_10 = arith.constant 0 : index
    %c0_11 = arith.constant 0 : index
    %24 = vector.load %arg4[%c0_10, %c0_11] : memref<16x1xf32, #tpu.memory_space<vmem>>, vector<16x1xf32>
    %25 = vector.broadcast %24 : vector<16x1xf32> to vector<16x128xf32>
    %26 = arith.mulf %23, %25 : vector<16x128xf32>
    %c0_12 = arith.constant 0 : index
    %c0_13 = arith.constant 0 : index
    %27 = vector.load %arg5[%c0_12, %c0_13] : memref<16x1xf32, #tpu.memory_space<vmem>>, vector<16x1xf32>
    %28 = vector.broadcast %27 : vector<16x1xf32> to vector<16x128xf32>
    %29 = arith.addf %26, %28 : vector<16x128xf32>
    %cst_14 = arith.constant 0.000000e+00 : f32
    %30 = vector.broadcast %cst_14 : f32 to vector<16x128xf32>
    %31 = arith.maximumf %29, %30 : vector<16x128xf32>
    %c0_i32 = arith.constant 0 : i32
    %32 = arith.cmpi eq, %arg0, %c0_i32 : i32
    %33 = arith.extui %32 : i1 to i32
    %c0_i32_15 = arith.constant 0 : i32
    %34 = arith.cmpi ne, %33, %c0_i32_15 : i32
    scf.if %34 {
      %c0_86 = arith.constant 0 : index
      %c0_87 = arith.constant 0 : index
      %219 = vector.load %arg16[%c0_86, %c0_87] : memref<16x128xf32, #tpu.memory_space<vmem>>, vector<16x128xf32>
      tpu.vector_store %arg16[%c0_86, %c0_87], %31 {strides = array<i32>} : memref<16x128xf32, #tpu.memory_space<vmem>>, vector<16x128xf32>,
    } else {
    }
    %c0_16 = arith.constant 0 : index
    %c0_17 = arith.constant 0 : index
    %35 = vector.load %arg16[%c0_16, %c0_17] : memref<16x128xf32, #tpu.memory_space<vmem>>, vector<16x128xf32>
    %36 = arith.truncf %35 : vector<16x128xf32> to vector<16x128xbf16>
    %c0_18 = arith.constant 0 : index
    %c0_19 = arith.constant 0 : index
    %37 = vector.load %arg6[%c0_18, %c0_19] : memref<128x128xbf16, #tpu.memory_space<vmem>>, vector<128x128xbf16>
    %cst_20 = arith.constant dense<0.000000e+00> : vector<16x128xf32>
    %38 = tpu.matmul %36, %37, %cst_20 {dimension_numbers = #tpu.dot_dimension_numbers<[1], [0], [0], [1], [0, 0, 1, 1], [], []>} : vector<16x128xbf16>, vector<128x128xbf16>, vector<16x128xf32> -> vector<16x128xf32>
    %39 = arith.negf %38 : vector<16x128xf32>
    %40 = math.exp %39 : vector<16x128xf32>
    %cst_21 = arith.constant 1.000000e+00 : f32
    %41 = vector.broadcast %cst_21 : f32 to vector<16x128xf32>
    %42 = arith.addf %41, %40 : vector<16x128xf32>
    %43 = arith.divf %41, %42 : vector<16x128xf32>
    %44 = arith.mulf %38, %43 : vector<16x128xf32>
    %cst_22 = arith.constant -5.000000e+00 : f32
    %45 = vector.broadcast %cst_22 : f32 to vector<16x128xf32>
    %46 = arith.subf %38, %45 : vector<16x128xf32>
    %cst_23 = arith.constant 4.000000e-01 : f32
    %47 = vector.broadcast %cst_23 : f32 to vector<16x128xf32>
    %48 = arith.mulf %46, %47 : vector<16x128xf32>
    %49 = math.floor %48 : vector<16x128xf32>
    %cst_24 = arith.constant 0.000000e+00 : f32
    %cst_25 = arith.constant 3.000000e+00 : f32
    %50 = vector.broadcast %cst_24 : f32 to vector<16x128xf32>
    %51 = arith.maximumf %50, %49 : vector<16x128xf32>
    %52 = vector.broadcast %cst_25 : f32 to vector<16x128xf32>
    %53 = arith.minimumf %52, %51 : vector<16x128xf32>
    %54 = arith.subf %48, %53 : vector<16x128xf32>
    %cst_26 = arith.constant -5.000000e+00 : f32
    %55 = vector.broadcast %cst_26 : f32 to vector<16x128xf32>
    %56 = arith.cmpf oge, %38, %55 : vector<16x128xf32>
    %cst_27 = arith.constant 5.000000e+00 : f32
    %57 = vector.broadcast %cst_27 : f32 to vector<16x128xf32>
    %58 = arith.cmpf olt, %38, %57 : vector<16x128xf32>
    %59 = arith.andi %56, %58 : vector<16x128xi1>
    %cst_28 = arith.constant 0.000000e+00 : f32
    %60 = vector.broadcast %cst_28 : f32 to vector<16x128xf32>
    %61 = arith.cmpf oeq, %53, %60 : vector<16x128xf32>
    %cst_29 = arith.constant 1.000000e+00 : f32
    %62 = vector.broadcast %cst_29 : f32 to vector<16x128xf32>
    %63 = arith.cmpf oeq, %53, %62 : vector<16x128xf32>
    %cst_30 = arith.constant 2.000000e+00 : f32
    %64 = vector.broadcast %cst_30 : f32 to vector<16x128xf32>
    %65 = arith.cmpf oeq, %53, %64 : vector<16x128xf32>
    %c15 = arith.constant 15 : index
    %c0_31 = arith.constant 0 : index
    %66 = vector.load %arg9[%c15, %c0_31] : memref<16x128xf32, #tpu.memory_space<vmem>>, vector<1x128xf32>
    %c11 = arith.constant 11 : index
    %c0_32 = arith.constant 0 : index
    %67 = vector.load %arg9[%c11, %c0_32] : memref<16x128xf32, #tpu.memory_space<vmem>>, vector<1x128xf32>
    %68 = vector.shape_cast %67 : vector<1x128xf32> to vector<1x128xf32>
    %69 = vector.broadcast %68 : vector<1x128xf32> to vector<16x128xf32>
    %70 = vector.shape_cast %66 : vector<1x128xf32> to vector<1x128xf32>
    %71 = vector.broadcast %70 : vector<1x128xf32> to vector<16x128xf32>
    %72 = arith.select %65, %69, %71 : vector<16x128xi1>, vector<16x128xf32>
    %c7 = arith.constant 7 : index
    %c0_33 = arith.constant 0 : index
    %73 = vector.load %arg9[%c7, %c0_33] : memref<16x128xf32, #tpu.memory_space<vmem>>, vector<1x128xf32>
    %74 = vector.shape_cast %73 : vector<1x128xf32> to vector<1x128xf32>
    %75 = vector.broadcast %74 : vector<1x128xf32> to vector<16x128xf32>
    %76 = arith.select %63, %75, %72 : vector<16x128xi1>, vector<16x128xf32>
    %c3 = arith.constant 3 : index
    %c0_34 = arith.constant 0 : index
    %77 = vector.load %arg9[%c3, %c0_34] : memref<16x128xf32, #tpu.memory_space<vmem>>, vector<1x128xf32>
    %78 = vector.shape_cast %77 : vector<1x128xf32> to vector<1x128xf32>
    %79 = vector.broadcast %78 : vector<1x128xf32> to vector<16x128xf32>
    %80 = arith.select %61, %79, %76 : vector<16x128xi1>, vector<16x128xf32>
    %81 = arith.mulf %80, %54 : vector<16x128xf32>
    %c14 = arith.constant 14 : index
    %c0_35 = arith.constant 0 : index
    %82 = vector.load %arg9[%c14, %c0_35] : memref<16x128xf32, #tpu.memory_space<vmem>>, vector<1x128xf32>
    %c10 = arith.constant 10 : index
    %c0_36 = arith.constant 0 : index
    %83 = vector.load %arg9[%c10, %c0_36] : memref<16x128xf32, #tpu.memory_space<vmem>>, vector<1x128xf32>
    %84 = vector.shape_cast %83 : vector<1x128xf32> to vector<1x128xf32>
    %85 = vector.broadcast %84 : vector<1x128xf32> to vector<16x128xf32>
    %86 = vector.shape_cast %82 : vector<1x128xf32> to vector<1x128xf32>
    %87 = vector.broadcast %86 : vector<1x128xf32> to vector<16x128xf32>
    %88 = arith.select %65, %85, %87 : vector<16x128xi1>, vector<16x128xf32>
    %c6 = arith.constant 6 : index
    %c0_37 = arith.constant 0 : index
    %89 = vector.load %arg9[%c6, %c0_37] : memref<16x128xf32, #tpu.memory_space<vmem>>, vector<1x128xf32>
    %90 = vector.shape_cast %89 : vector<1x128xf32> to vector<1x128xf32>
    %91 = vector.broadcast %90 : vector<1x128xf32> to vector<16x128xf32>
    %92 = arith.select %63, %91, %88 : vector<16x128xi1>, vector<16x128xf32>
    %c2 = arith.constant 2 : index
    %c0_38 = arith.constant 0 : index
    %93 = vector.load %arg9[%c2, %c0_38] : memref<16x128xf32, #tpu.memory_space<vmem>>, vector<1x128xf32>
    %94 = vector.shape_cast %93 : vector<1x128xf32> to vector<1x128xf32>
    %95 = vector.broadcast %94 : vector<1x128xf32> to vector<16x128xf32>
    %96 = arith.select %61, %95, %92 : vector<16x128xi1>, vector<16x128xf32>
    %97 = arith.addf %81, %96 : vector<16x128xf32>
    %98 = arith.mulf %97, %54 : vector<16x128xf32>
    %c13 = arith.constant 13 : index
    %c0_39 = arith.constant 0 : index
    %99 = vector.load %arg9[%c13, %c0_39] : memref<16x128xf32, #tpu.memory_space<vmem>>, vector<1x128xf32>
    %c9 = arith.constant 9 : index
    %c0_40 = arith.constant 0 : index
    %100 = vector.load %arg9[%c9, %c0_40] : memref<16x128xf32, #tpu.memory_space<vmem>>, vector<1x128xf32>
    %101 = vector.shape_cast %100 : vector<1x128xf32> to vector<1x128xf32>
    %102 = vector.broadcast %101 : vector<1x128xf32> to vector<16x128xf32>
    %103 = vector.shape_cast %99 : vector<1x128xf32> to vector<1x128xf32>
    %104 = vector.broadcast %103 : vector<1x128xf32> to vector<16x128xf32>
    %105 = arith.select %65, %102, %104 : vector<16x128xi1>, vector<16x128xf32>
    %c5 = arith.constant 5 : index
    %c0_41 = arith.constant 0 : index
    %106 = vector.load %arg9[%c5, %c0_41] : memref<16x128xf32, #tpu.memory_space<vmem>>, vector<1x128xf32>
    %107 = vector.shape_cast %106 : vector<1x128xf32> to vector<1x128xf32>
    %108 = vector.broadcast %107 : vector<1x128xf32> to vector<16x128xf32>
    %109 = arith.select %63, %108, %105 : vector<16x128xi1>, vector<16x128xf32>
    %c1 = arith.constant 1 : index
    %c0_42 = arith.constant 0 : index
    %110 = vector.load %arg9[%c1, %c0_42] : memref<16x128xf32, #tpu.memory_space<vmem>>, vector<1x128xf32>
    %111 = vector.shape_cast %110 : vector<1x128xf32> to vector<1x128xf32>
    %112 = vector.broadcast %111 : vector<1x128xf32> to vector<16x128xf32>
    %113 = arith.select %61, %112, %109 : vector<16x128xi1>, vector<16x128xf32>
    %114 = arith.addf %98, %113 : vector<16x128xf32>
    %115 = arith.mulf %114, %54 : vector<16x128xf32>
    %c12 = arith.constant 12 : index
    %c0_43 = arith.constant 0 : index
    %116 = vector.load %arg9[%c12, %c0_43] : memref<16x128xf32, #tpu.memory_space<vmem>>, vector<1x128xf32>
    %c8 = arith.constant 8 : index
    %c0_44 = arith.constant 0 : index
    %117 = vector.load %arg9[%c8, %c0_44] : memref<16x128xf32, #tpu.memory_space<vmem>>, vector<1x128xf32>
    %118 = vector.shape_cast %117 : vector<1x128xf32> to vector<1x128xf32>
    %119 = vector.broadcast %118 : vector<1x128xf32> to vector<16x128xf32>
    %120 = vector.shape_cast %116 : vector<1x128xf32> to vector<1x128xf32>
    %121 = vector.broadcast %120 : vector<1x128xf32> to vector<16x128xf32>
    %122 = arith.select %65, %119, %121 : vector<16x128xi1>, vector<16x128xf32>
    %c4 = arith.constant 4 : index
    %c0_45 = arith.constant 0 : index
    %123 = vector.load %arg9[%c4, %c0_45] : memref<16x128xf32, #tpu.memory_space<vmem>>, vector<1x128xf32>
    %124 = vector.shape_cast %123 : vector<1x128xf32> to vector<1x128xf32>
    %125 = vector.broadcast %124 : vector<1x128xf32> to vector<16x128xf32>
    %126 = arith.select %63, %125, %122 : vector<16x128xi1>, vector<16x128xf32>
    %c0_46 = arith.constant 0 : index
    %c0_47 = arith.constant 0 : index
    %127 = vector.load %arg9[%c0_46, %c0_47] : memref<16x128xf32, #tpu.memory_space<vmem>>, vector<1x128xf32>
    %128 = vector.shape_cast %127 : vector<1x128xf32> to vector<1x128xf32>
    %129 = vector.broadcast %128 : vector<1x128xf32> to vector<16x128xf32>
    %130 = arith.select %61, %129, %126 : vector<16x128xi1>, vector<16x128xf32>
    %131 = arith.addf %115, %130 : vector<16x128xf32>
    %cst_48 = arith.constant 0.000000e+00 : f32
    %132 = vector.broadcast %cst_48 : f32 to vector<16x128xf32>
    %133 = arith.select %59, %131, %132 : vector<16x128xi1>, vector<16x128xf32>
    %c0_49 = arith.constant 0 : index
    %c0_50 = arith.constant 0 : index
    %134 = vector.load %arg10[%c0_49, %c0_50] : memref<1x128xf32, #tpu.memory_space<vmem>>, vector<1x128xf32>
    %135 = vector.broadcast %134 : vector<1x128xf32> to vector<16x128xf32>
    %136 = arith.mulf %135, %44 : vector<16x128xf32>
    %137 = arith.addf %136, %133 : vector<16x128xf32>
    %c0_51 = arith.constant 0 : index
    %c0_52 = arith.constant 0 : index
    %138 = vector.load %arg11[%c0_51, %c0_52] : memref<16x1xf32, #tpu.memory_space<vmem>>, vector<16x1xf32>
    %139 = vector.broadcast %138 : vector<16x1xf32> to vector<16x128xf32>
    %140 = arith.mulf %137, %139 : vector<16x128xf32>
    %cst_53 = arith.constant dense<0.000000e+00> : vector<128xf32>
    %141 = vector.multi_reduction <add>, %140, %cst_53 [0] : vector<16x128xf32> to vector<128xf32>
    %142 = vector.shape_cast %141 : vector<128xf32> to vector<1x128xf32>
    %c0_54 = arith.constant 0 : index
    %c0_55 = arith.constant 0 : index
    %143 = vector.load %arg8[%c0_54, %c0_55] : memref<3x128xf32, #tpu.memory_space<vmem>>, vector<3x128xf32>
    %cst_56 = arith.constant 0.000000e+00 : f32
    %144 = vector.broadcast %cst_56 : f32 to vector<3x128xf32>
    %145 = arith.cmpf ogt, %143, %144 : vector<3x128xf32>
    %cst_57 = arith.constant -1.000000e+30 : f32
    %146 = vector.shape_cast %142 : vector<1x128xf32> to vector<1x128xf32>
    %147 = vector.broadcast %146 : vector<1x128xf32> to vector<3x128xf32>
    %148 = vector.broadcast %cst_57 : f32 to vector<3x128xf32>
    %149 = arith.select %145, %147, %148 : vector<3x128xi1>, vector<3x128xf32>
    %cst_58 = arith.constant dense<0xFF800000> : vector<3xf32>
    %150 = vector.multi_reduction <maximumf>, %149, %cst_58 [1] : vector<3x128xf32> to vector<3xf32>
    %151 = vector.shape_cast %150 : vector<3xf32> to vector<3x1xf32>
    %152 = vector.broadcast %151 : vector<3x1xf32> to vector<3x128xf32>
    %153 = arith.mulf %143, %152 : vector<3x128xf32>
    %cst_59 = arith.constant dense<0.000000e+00> : vector<128xf32>
    %154 = vector.multi_reduction <add>, %153, %cst_59 [0] : vector<3x128xf32> to vector<128xf32>
    %155 = vector.shape_cast %154 : vector<128xf32> to vector<1x128xf32>
    %156 = arith.subf %142, %155 : vector<1x128xf32>
    %157 = math.exp %156 : vector<1x128xf32>
    %158 = vector.broadcast %157 : vector<1x128xf32> to vector<3x128xf32>
    %159 = arith.mulf %143, %158 : vector<3x128xf32>
    %cst_60 = arith.constant dense<0.000000e+00> : vector<3xf32>
    %160 = vector.multi_reduction <add>, %159, %cst_60 [1] : vector<3x128xf32> to vector<3xf32>
    %161 = vector.shape_cast %160 : vector<3xf32> to vector<3x1xf32>
    %162 = vector.broadcast %161 : vector<3x1xf32> to vector<3x128xf32>
    %163 = arith.mulf %143, %162 : vector<3x128xf32>
    %cst_61 = arith.constant dense<0.000000e+00> : vector<128xf32>
    %164 = vector.multi_reduction <add>, %163, %cst_61 [0] : vector<3x128xf32> to vector<128xf32>
    %165 = vector.shape_cast %164 : vector<128xf32> to vector<1x128xf32>
    %cst_62 = arith.constant 0.000000e+00 : f32
    %166 = vector.broadcast %cst_62 : f32 to vector<1x128xf32>
    %167 = arith.cmpf ogt, %165, %166 : vector<1x128xf32>
    %cst_63 = arith.constant 1.000000e+00 : f32
    %168 = vector.broadcast %cst_63 : f32 to vector<1x128xf32>
    %169 = arith.select %167, %165, %168 : vector<1x128xi1>, vector<1x128xf32>
    %170 = tpu.reciprocal %169 {approx = true} : vector<1x128xf32> -> vector<1x128xf32>
    %171 = arith.mulf %157, %170 : vector<1x128xf32>
    %cst_64 = arith.constant 0.000000e+00 : f32
    %172 = vector.broadcast %cst_64 : f32 to vector<1x128xf32>
    %173 = arith.select %167, %171, %172 : vector<1x128xi1>, vector<1x128xf32>
    %174 = vector.broadcast %173 : vector<1x128xf32> to vector<16x128xf32>
    %175 = arith.mulf %137, %174 : vector<16x128xf32>
    %176 = arith.truncf %175 : vector<16x128xf32> to vector<16x128xbf16>
    %c0_65 = arith.constant 0 : index
    %c0_66 = arith.constant 0 : index
    %177 = vector.load %arg7[%c0_65, %c0_66] : memref<128x128xbf16, #tpu.memory_space<vmem>>, vector<128x128xbf16>
    %cst_67 = arith.constant dense<0.000000e+00> : vector<16x128xf32>
    %178 = tpu.matmul %176, %177, %cst_67 {dimension_numbers = #tpu.dot_dimension_numbers<[1], [0], [0], [1], [0, 0, 1, 1], [], []>} : vector<16x128xbf16>, vector<128x128xbf16>, vector<16x128xf32> -> vector<16x128xf32>
    %c0_68 = arith.constant 0 : index
    %c0_69 = arith.constant 0 : index
    %179 = vector.load %arg12[%c0_68, %c0_69] : memref<48x16xf32, #tpu.memory_space<vmem>>, vector<48x16xf32>
    %cst_70 = arith.constant dense<0.000000e+00> : vector<48x128xf32>
    %180 = tpu.matmul %179, %178, %cst_70 {dimension_numbers = #tpu.dot_dimension_numbers<[1], [0], [0], [1], [0, 0, 1, 1], [], []>} : vector<48x16xf32>, vector<16x128xf32>, vector<48x128xf32> -> vector<48x128xf32>
    %c0_71 = arith.constant 0 : index
    %c0_72 = arith.constant 0 : index
    %181 = vector.load %arg14[%c0_71, %c0_72] : memref<48x1xf32, #tpu.memory_space<vmem>>, vector<48x1xf32>
    %182 = vector.broadcast %181 : vector<48x1xf32> to vector<48x128xf32>
    %183 = arith.addf %180, %182 : vector<48x128xf32>
    %c0_73 = arith.constant 0 : index
    %c0_74 = arith.constant 0 : index
    %184 = vector.load %arg13[%c0_73, %c0_74] : memref<48x16xf32, #tpu.memory_space<vmem>>, vector<48x16xf32>
    %cst_75 = arith.constant dense<0.000000e+00> : vector<48x128xf32>
    %185 = tpu.matmul %184, %35, %cst_75 {dimension_numbers = #tpu.dot_dimension_numbers<[1], [0], [0], [1], [0, 0, 1, 1], [], []>} : vector<48x16xf32>, vector<16x128xf32>, vector<48x128xf32> -> vector<48x128xf32>
    %c0_76 = arith.constant 0 : index
    %c0_77 = arith.constant 0 : index
    %186 = vector.load %arg15[%c0_76, %c0_77] : memref<48x1xf32, #tpu.memory_space<vmem>>, vector<48x1xf32>
    %187 = vector.broadcast %186 : vector<48x1xf32> to vector<48x128xf32>
    %188 = arith.addf %185, %187 : vector<48x128xf32>
    %189 = vector.extract_strided_slice %183 {offsets = [0, 0], sizes = [16, 128], strides = [1, 1]} : vector<48x128xf32> to vector<16x128xf32>
    %190 = vector.extract_strided_slice %188 {offsets = [0, 0], sizes = [16, 128], strides = [1, 1]} : vector<48x128xf32> to vector<16x128xf32>
    %191 = arith.addf %189, %190 : vector<16x128xf32>
    %192 = arith.negf %191 : vector<16x128xf32>
    %193 = math.exp %192 : vector<16x128xf32>
    %cst_78 = arith.constant 1.000000e+00 : f32
    %194 = vector.broadcast %cst_78 : f32 to vector<16x128xf32>
    %195 = arith.addf %194, %193 : vector<16x128xf32>
    %196 = arith.divf %194, %195 : vector<16x128xf32>
    %197 = vector.extract_strided_slice %183 {offsets = [16, 0], sizes = [16, 128], strides = [1, 1]} : vector<48x128xf32> to vector<16x128xf32>
    %198 = vector.extract_strided_slice %188 {offsets = [16, 0], sizes = [16, 128], strides = [1, 1]} : vector<48x128xf32> to vector<16x128xf32>
    %199 = arith.addf %197, %198 : vector<16x128xf32>
    %200 = arith.negf %199 : vector<16x128xf32>
    %201 = math.exp %200 : vector<16x128xf32>
    %cst_79 = arith.constant 1.000000e+00 : f32
    %202 = vector.broadcast %cst_79 : f32 to vector<16x128xf32>
    %203 = arith.addf %202, %201 : vector<16x128xf32>
    %204 = arith.divf %202, %203 : vector<16x128xf32>
    %205 = vector.extract_strided_slice %183 {offsets = [32, 0], sizes = [16, 128], strides = [1, 1]} : vector<48x128xf32> to vector<16x128xf32>
    %206 = vector.extract_strided_slice %188 {offsets = [32, 0], sizes = [16, 128], strides = [1, 1]} : vector<48x128xf32> to vector<16x128xf32>
    %207 = arith.mulf %196, %206 : vector<16x128xf32>
    %208 = arith.addf %205, %207 : vector<16x128xf32>
    %209 = math.tanh %208 : vector<16x128xf32>
    %cst_80 = arith.constant 1.000000e+00 : f32
    %210 = vector.broadcast %cst_80 : f32 to vector<16x128xf32>
    %211 = arith.subf %210, %204 : vector<16x128xf32>
    %212 = arith.mulf %211, %209 : vector<16x128xf32>
    %213 = arith.mulf %204, %35 : vector<16x128xf32>
    %214 = arith.addf %212, %213 : vector<16x128xf32>
    %c0_81 = arith.constant 0 : index
    %c0_82 = arith.constant 0 : index
    %215 = vector.load %arg16[%c0_81, %c0_82] : memref<16x128xf32, #tpu.memory_space<vmem>>, vector<16x128xf32>
    tpu.vector_store %arg16[%c0_81, %c0_82], %214 {strides = array<i32>} : memref<16x128xf32, #tpu.memory_space<vmem>>, vector<16x128xf32>,
    %c0_83 = arith.constant 0 : index
    %c0_84 = arith.constant 0 : index
    %c0_85 = arith.constant 0 : index
    %216 = vector.load %arg17[%c0_83, %c0_84, %c0_85] : memref<1x1x128xf32, #tpu.memory_space<vmem>>, vector<1x1x128xf32>
    %217 = vector.shape_cast %216 : vector<1x1x128xf32> to vector<1x128xf32>
    %218 = vector.shape_cast %173 : vector<1x128xf32> to vector<1x1x128xf32>
    tpu.vector_store %arg17[%c0_83, %c0_84, %c0_85], %218 {strides = array<i32>} : memref<1x1x128xf32, #tpu.memory_space<vmem>>, vector<1x1x128xf32>,
    return
  }
  func.func @transform_0(%arg0: i32) -> (i32, i32) {
    %c0_i32 = arith.constant 0 : i32
    %c0_i32_0 = arith.constant 0 : i32
    %c0_i32_1 = arith.constant 0 : i32
    return %c0_i32, %c0_i32_0 : i32, i32
  }
  func.func @transform_1(%arg0: i32) -> (i32, i32) {
    %c0_i32 = arith.constant 0 : i32
    %c0_i32_0 = arith.constant 0 : i32
    %c0_i32_1 = arith.constant 0 : i32
    return %c0_i32, %c0_i32_0 : i32, i32
  }
  func.func @transform_2(%arg0: i32) -> (i32, i32) {
    %c0_i32 = arith.constant 0 : i32
    %c0_i32_0 = arith.constant 0 : i32
    %c0_i32_1 = arith.constant 0 : i32
    return %c0_i32, %c0_i32_0 : i32, i32
  }
  func.func @transform_3(%arg0: i32) -> (i32, i32) {
    %c0_i32 = arith.constant 0 : i32
    %c0_i32_0 = arith.constant 0 : i32
    %c0_i32_1 = arith.constant 0 : i32
    return %c0_i32, %c0_i32_0 : i32, i32
  }
  func.func @transform_4(%arg0: i32) -> (i32, i32) {
    %c0_i32 = arith.constant 0 : i32
    %c0_i32_0 = arith.constant 0 : i32
    %c0_i32_1 = arith.constant 0 : i32
    return %c0_i32, %c0_i32_0 : i32, i32
  }
  func.func @transform_5(%arg0: i32) -> (i32, i32) {
    %c0_i32 = arith.constant 0 : i32
    %c0_i32_0 = arith.constant 0 : i32
    %c0_i32_1 = arith.constant 0 : i32
    return %c0_i32, %c0_i32_0 : i32, i32
  }
  func.func @transform_6(%arg0: i32) -> (i32, i32) {
    %c0_i32 = arith.constant 0 : i32
    %c0_i32_0 = arith.constant 0 : i32
    %c0_i32_1 = arith.constant 0 : i32
    return %c0_i32, %c0_i32_0 : i32, i32
  }
  func.func @transform_7(%arg0: i32) -> (i32, i32) {
    %c0_i32 = arith.constant 0 : i32
    %c0_i32_0 = arith.constant 0 : i32
    %c0_i32_1 = arith.constant 0 : i32
    return %c0_i32, %c0_i32_0 : i32, i32
  }
  func.func @transform_8(%arg0: i32) -> (i32, i32) {
    %c0_i32 = arith.constant 0 : i32
    %c0_i32_0 = arith.constant 0 : i32
    %c0_i32_1 = arith.constant 0 : i32
    return %c0_i32, %c0_i32_0 : i32, i32
  }
  func.func @transform_9(%arg0: i32) -> (i32, i32) {
    %c0_i32 = arith.constant 0 : i32
    %c0_i32_0 = arith.constant 0 : i32
    %c0_i32_1 = arith.constant 0 : i32
    return %c0_i32, %c0_i32_0 : i32, i32
  }
  func.func @transform_10(%arg0: i32) -> (i32, i32) {
    %c0_i32 = arith.constant 0 : i32
    %c0_i32_0 = arith.constant 0 : i32
    %c0_i32_1 = arith.constant 0 : i32
    return %c0_i32, %c0_i32_0 : i32, i32
  }
  func.func @transform_11(%arg0: i32) -> (i32, i32) {
    %c0_i32 = arith.constant 0 : i32
    %c0_i32_0 = arith.constant 0 : i32
    %c0_i32_1 = arith.constant 0 : i32
    return %c0_i32, %c0_i32_0 : i32, i32
  }
  func.func @transform_12(%arg0: i32) -> (i32, i32) {
    %c0_i32 = arith.constant 0 : i32
    %c0_i32_0 = arith.constant 0 : i32
    %c0_i32_1 = arith.constant 0 : i32
    return %c0_i32, %c0_i32_0 : i32, i32
  }
  func.func @transform_13(%arg0: i32) -> (i32, i32) {
    %c0_i32 = arith.constant 0 : i32
    %c0_i32_0 = arith.constant 0 : i32
    %c0_i32_1 = arith.constant 0 : i32
    return %c0_i32, %c0_i32_0 : i32, i32
  }
  func.func @transform_14(%arg0: i32) -> (i32, i32) {
    %c0_i32 = arith.constant 0 : i32
    %c0_i32_0 = arith.constant 0 : i32
    %c0_i32_1 = arith.constant 0 : i32
    return %c0_i32, %c0_i32_0 : i32, i32
  }
  func.func @transform_15(%arg0: i32) -> (i32, i32) {
    %c0_i32 = arith.constant 0 : i32
    %c0_i32_0 = arith.constant 0 : i32
    %c0_i32_1 = arith.constant 0 : i32
    return %c0_i32, %c0_i32_0 : i32, i32
  }
  func.func @transform_16(%arg0: i32) -> (i32, i32, i32) {
    %c0_i32 = arith.constant 0 : i32
    %c0_i32_0 = arith.constant 0 : i32
    %c0_i32_1 = arith.constant 0 : i32
    return %arg0, %c0_i32, %c0_i32_0 : i32, i32, i32
  }
}

</mosaic_0001>

<llo_original>
// kernel: tpu_custom_call.1
$region0: #{tpu_custom_call.1}
  #allocation0 [shape = 'u32[]', space=smem, size = 0x4, offset = 0x4, fixed_abs, tag = 'smem constant byte address 0x4 - core index']
  #allocation1 [shape = 'u32[144,128]{1,0:T(1,128)}', space=vmem, size = 0x12000, scoped, tag = 'internal scratch']
  %s0 = inlined_call_operand.vmem [shape: f32[4,128], index: 0, kind: input, shape index: {}]
  %s1 = inlined_call_operand.vmem [shape: f32[16,4], index: 1, kind: input, shape index: {}]
  %s2 = inlined_call_operand.vmem [shape: f32[16,1], index: 2, kind: input, shape index: {}]
  %s3 = inlined_call_operand.vmem [shape: f32[16,1], index: 3, kind: input, shape index: {}]
  %s4 = inlined_call_operand.vmem [shape: f32[16,1], index: 4, kind: input, shape index: {}]
  %s5 = inlined_call_operand.vmem [shape: bf16[128,128], index: 5, kind: input, shape index: {}]
  %s6 = inlined_call_operand.vmem [shape: bf16[128,128], index: 6, kind: input, shape index: {}]
  %s7 = inlined_call_operand.vmem [shape: f32[3,128], index: 7, kind: input, shape index: {}]
  %s8 = inlined_call_operand.vmem [shape: f32[16,128], index: 8, kind: input, shape index: {}]
  %s9 = inlined_call_operand.vmem [shape: f32[1,128], index: 9, kind: input, shape index: {}]
  %s10 = inlined_call_operand.vmem [shape: f32[16,1], index: 10, kind: input, shape index: {}]
  %s11 = inlined_call_operand.vmem [shape: f32[48,16], index: 11, kind: input, shape index: {}]
  %s12 = inlined_call_operand.vmem [shape: f32[48,16], index: 12, kind: input, shape index: {}]
  %s13 = inlined_call_operand.vmem [shape: f32[48,1], index: 13, kind: input, shape index: {}]
  %s14 = inlined_call_operand.vmem [shape: f32[48,1], index: 14, kind: input, shape index: {}]
  %s15 = inlined_call_operand.hbm [shape: f32[16,128], index: 15, kind: output, shape index: {0}]
  %s16 = inlined_call_operand.hbm [shape: f32[2,1,128], index: 16, kind: output, shape index: {1}]
  %17 = xla_tuple %s15, %s16
  %s18 = sld [smem:[#allocation0]]
  $region105: #{tpu_custom_call.1} parent=0
    _
  %s20 = ssub.s32 1, %s18
  %s21 = scalar_select 0, %s20, %s18
  $region1: #{tpu_custom_call.1} parent=0
    #allocation2 [shape = 'u8[8192]{0}', space=vmem, size = 0x2000, scoped, tag = 'output window, operand 0, single buffered']
    #allocation3 [shape = 's32[2]{0}', space=sflag, size = 0x8, scoped, tag = 'scoped memory for tpu_custom_call.1']
    #allocation4 [shape = 'u8[1024]{0}', space=vmem, size = 0x400, scoped, tag = 'output window, operand 1']
    #allocation5 [shape = 's32[2]{0}', space=sflag, size = 0x8, scoped, tag = 'scoped memory for tpu_custom_call.1']
    %22 = vsyncpa [#allocation3], 0
    %23 = vsyncpa [#allocation5], 0
    %s24 = scalar_lea.sflag [#allocation5], 1
    %25 = vsyncpa %s24, 0
    loop: start=0, step=1, limit=4
    $region2: #{tpu_custom_call.1} parent=1 // loop_pre_header
      _
    $region3: #{tpu_custom_call.1} parent=1 // loop_header
      %s27 = sphi 0, %s31
      %p28 = scmp.ge.s32.totalorder %s27, 4
      %s35 = sphi 0, %s35
      %s37 = sphi 0, %s35
      %s38 = sphi 0, %s37
      %s52 = sphi 0, %s38
      %s56 = sphi 0, %s56
      %s58 = sphi 0, %s56
      %s59 = sphi 0, %s58
      %s73 = sphi 0, %s59
      %s77 = sphi 0, %s77
      %s79 = sphi 0, %s77
      %s80 = sphi 0, %s79
      %s94 = sphi 0, %s80
      %s98 = sphi 0, %s98
      %s100 = sphi 0, %s98
      %s101 = sphi 0, %s100
      %s115 = sphi 0, %s101
      %s119 = sphi 0, %s119
      %s121 = sphi 0, %s119
      %s122 = sphi 0, %s121
      %s136 = sphi 0, %s122
      %s140 = sphi 0, %s140
      %s142 = sphi 0, %s140
      %s143 = sphi 0, %s142
      %s157 = sphi 0, %s143
      %s161 = sphi 0, %s161
      %s163 = sphi 0, %s161
      %s164 = sphi 0, %s163
      %s178 = sphi 0, %s164
      %s182 = sphi 0, %s182
      %s184 = sphi 0, %s182
      %s185 = sphi 0, %s184
      %s199 = sphi 0, %s185
      %s203 = sphi 0, %s203
      %s205 = sphi 0, %s203
      %s206 = sphi 0, %s205
      %s220 = sphi 0, %s206
      %s224 = sphi 0, %s224
      %s226 = sphi 0, %s224
      %s227 = sphi 0, %s226
      %s241 = sphi 0, %s227
      %s245 = sphi 0, %s245
      %s247 = sphi 0, %s245
      %s248 = sphi 0, %s247
      %s262 = sphi 0, %s248
      %s266 = sphi 0, %s266
      %s268 = sphi 0, %s266
      %s269 = sphi 0, %s268
      %s283 = sphi 0, %s269
      %s287 = sphi 0, %s287
      %s289 = sphi 0, %s287
      %s290 = sphi 0, %s289
      %s304 = sphi 0, %s290
      %s308 = sphi 0, %s308
      %s310 = sphi 0, %s308
      %s311 = sphi 0, %s310
      %s325 = sphi 0, %s311
      %s329 = sphi 0, %s329
      %s331 = sphi 0, %s329
      %s332 = sphi 0, %s331
      %s346 = sphi 0, %s332
      %s350 = sphi 0, %s350
      %s352 = sphi 0, %s350
      %s353 = sphi 0, %s352
      %s367 = sphi 0, %s353
      %s373 = sphi 0, %s375
      %s376 = sphi 0, %s373
      %s377 = sphi 0, %s376
      %s393 = sphi 0, %s377
    $region4: #{tpu_custom_call.1} parent=1 // loop_header_branch
      %30 = sbr.rel (%p28) target = $region8
    $region5: #{tpu_custom_call.1} parent=1 // loop_body
      %s32 = ssub.s32 %s27, 1
      %s33 = ssub.s32 %s27, 2
      %s34 = sadd.s32 %s27, 1
      %s36 = sadd.s32 %s35, 1
      %p39 = scmp.eq.s32.totalorder %s27, 1
      %p40 = scmp.ne.s32.totalorder %s35, %s37
      %p41 = scmp.eq.s32.totalorder %s27, 0
      %p42 = por %p40, %p41
      %p43 = scmp.ne.s32.totalorder %s35, %s37
      %p44 = scmp.eq.s32.totalorder %s32, 1
      %p45 = por %p43, %p44
      %p46 = scmp.ne.s32.totalorder %s37, %s38
      %p47 = scmp.eq.s32.totalorder %s32, 0
      %p48 = por %p46, %p47
      %p49 = scmp.ne.s32.totalorder %s37, %s38
      %p50 = scmp.eq.s32.totalorder %s33, 1
      %p51 = por %p49, %p50
      %p53 = scmp.ne.s32.totalorder %s38, %s52
      %p54 = scmp.eq.s32.totalorder %s33, 0
      %p55 = por %p53, %p54
      %s57 = sadd.s32 %s56, 1
      %p60 = scmp.eq.s32.totalorder %s27, 1
      %p61 = scmp.ne.s32.totalorder %s56, %s58
      %p62 = scmp.eq.s32.totalorder %s27, 0
      %p63 = por %p61, %p62
      %p64 = scmp.ne.s32.totalorder %s56, %s58
      %p65 = scmp.eq.s32.totalorder %s32, 1
      %p66 = por %p64, %p65
      %p67 = scmp.ne.s32.totalorder %s58, %s59
      %p68 = scmp.eq.s32.totalorder %s32, 0
      %p69 = por %p67, %p68
      %p70 = scmp.ne.s32.totalorder %s58, %s59
      %p71 = scmp.eq.s32.totalorder %s33, 1
      %p72 = por %p70, %p71
      %p74 = scmp.ne.s32.totalorder %s59, %s73
      %p75 = scmp.eq.s32.totalorder %s33, 0
      %p76 = por %p74, %p75
      %s78 = sadd.s32 %s77, 1
      %p81 = scmp.eq.s32.totalorder %s27, 1
      %p82 = scmp.ne.s32.totalorder %s77, %s79
      %p83 = scmp.eq.s32.totalorder %s27, 0
      %p84 = por %p82, %p83
      %p85 = scmp.ne.s32.totalorder %s77, %s79
      %p86 = scmp.eq.s32.totalorder %s32, 1
      %p87 = por %p85, %p86
      %p88 = scmp.ne.s32.totalorder %s79, %s80
      %p89 = scmp.eq.s32.totalorder %s32, 0
      %p90 = por %p88, %p89
      %p91 = scmp.ne.s32.totalorder %s79, %s80
      %p92 = scmp.eq.s32.totalorder %s33, 1
      %p93 = por %p91, %p92
      %p95 = scmp.ne.s32.totalorder %s80, %s94
      %p96 = scmp.eq.s32.totalorder %s33, 0
      %p97 = por %p95, %p96
      %s99 = sadd.s32 %s98, 1
      %p102 = scmp.eq.s32.totalorder %s27, 1
      %p103 = scmp.ne.s32.totalorder %s98, %s100
      %p104 = scmp.eq.s32.totalorder %s27, 0
      %p105 = por %p103, %p104
      %p106 = scmp.ne.s32.totalorder %s98, %s100
      %p107 = scmp.eq.s32.totalorder %s32, 1
      %p108 = por %p106, %p107
      %p109 = scmp.ne.s32.totalorder %s100, %s101
      %p110 = scmp.eq.s32.totalorder %s32, 0
      %p111 = por %p109, %p110
      %p112 = scmp.ne.s32.totalorder %s100, %s101
      %p113 = scmp.eq.s32.totalorder %s33, 1
      %p114 = por %p112, %p113
      %p116 = scmp.ne.s32.totalorder %s101, %s115
      %p117 = scmp.eq.s32.totalorder %s33, 0
      %p118 = por %p116, %p117
      %s120 = sadd.s32 %s119, 1
      %p123 = scmp.eq.s32.totalorder %s27, 1
      %p124 = scmp.ne.s32.totalorder %s119, %s121
      %p125 = scmp.eq.s32.totalorder %s27, 0
      %p126 = por %p124, %p125
      %p127 = scmp.ne.s32.totalorder %s119, %s121
      %p128 = scmp.eq.s32.totalorder %s32, 1
      %p129 = por %p127, %p128
      %p130 = scmp.ne.s32.totalorder %s121, %s122
      %p131 = scmp.eq.s32.totalorder %s32, 0
      %p132 = por %p130, %p131
      %p133 = scmp.ne.s32.totalorder %s121, %s122
      %p134 = scmp.eq.s32.totalorder %s33, 1
      %p135 = por %p133, %p134
      %p137 = scmp.ne.s32.totalorder %s122, %s136
      %p138 = scmp.eq.s32.totalorder %s33, 0
      %p139 = por %p137, %p138
      %s141 = sadd.s32 %s140, 1
      %p144 = scmp.eq.s32.totalorder %s27, 1
      %p145 = scmp.ne.s32.totalorder %s140, %s142
      %p146 = scmp.eq.s32.totalorder %s27, 0
      %p147 = por %p145, %p146
      %p148 = scmp.ne.s32.totalorder %s140, %s142
      %p149 = scmp.eq.s32.totalorder %s32, 1
      %p150 = por %p148, %p149
      %p151 = scmp.ne.s32.totalorder %s142, %s143
      %p152 = scmp.eq.s32.totalorder %s32, 0
      %p153 = por %p151, %p152
      %p154 = scmp.ne.s32.totalorder %s142, %s143
      %p155 = scmp.eq.s32.totalorder %s33, 1
      %p156 = por %p154, %p155
      %p158 = scmp.ne.s32.totalorder %s143, %s157
      %p159 = scmp.eq.s32.totalorder %s33, 0
      %p160 = por %p158, %p159
      %s162 = sadd.s32 %s161, 1
      %p165 = scmp.eq.s32.totalorder %s27, 1
      %p166 = scmp.ne.s32.totalorder %s161, %s163
      %p167 = scmp.eq.s32.totalorder %s27, 0
      %p168 = por %p166, %p167
      %p169 = scmp.ne.s32.totalorder %s161, %s163
      %p170 = scmp.eq.s32.totalorder %s32, 1
      %p171 = por %p169, %p170
      %p172 = scmp.ne.s32.totalorder %s163, %s164
      %p173 = scmp.eq.s32.totalorder %s32, 0
      %p174 = por %p172, %p173
      %p175 = scmp.ne.s32.totalorder %s163, %s164
      %p176 = scmp.eq.s32.totalorder %s33, 1
      %p177 = por %p175, %p176
      %p179 = scmp.ne.s32.totalorder %s164, %s178
      %p180 = scmp.eq.s32.totalorder %s33, 0
      %p181 = por %p179, %p180
      %s183 = sadd.s32 %s182, 1
      %p186 = scmp.eq.s32.totalorder %s27, 1
      %p187 = scmp.ne.s32.totalorder %s182, %s184
      %p188 = scmp.eq.s32.totalorder %s27, 0
      %p189 = por %p187, %p188
      %p190 = scmp.ne.s32.totalorder %s182, %s184
      %p191 = scmp.eq.s32.totalorder %s32, 1
      %p192 = por %p190, %p191
      %p193 = scmp.ne.s32.totalorder %s184, %s185
      %p194 = scmp.eq.s32.totalorder %s32, 0
      %p195 = por %p193, %p194
      %p196 = scmp.ne.s32.totalorder %s184, %s185
      %p197 = scmp.eq.s32.totalorder %s33, 1
      %p198 = por %p196, %p197
      %p200 = scmp.ne.s32.totalorder %s185, %s199
      %p201 = scmp.eq.s32.totalorder %s33, 0
      %p202 = por %p200, %p201
      %s204 = sadd.s32 %s203, 1
      %p207 = scmp.eq.s32.totalorder %s27, 1
      %p208 = scmp.ne.s32.totalorder %s203, %s205
      %p209 = scmp.eq.s32.totalorder %s27, 0
      %p210 = por %p208, %p209
      %p211 = scmp.ne.s32.totalorder %s203, %s205
      %p212 = scmp.eq.s32.totalorder %s32, 1
      %p213 = por %p211, %p212
      %p214 = scmp.ne.s32.totalorder %s205, %s206
      %p215 = scmp.eq.s32.totalorder %s32, 0
      %p216 = por %p214, %p215
      %p217 = scmp.ne.s32.totalorder %s205, %s206
      %p218 = scmp.eq.s32.totalorder %s33, 1
      %p219 = por %p217, %p218
      %p221 = scmp.ne.s32.totalorder %s206, %s220
      %p222 = scmp.eq.s32.totalorder %s33, 0
      %p223 = por %p221, %p222
      %s225 = sadd.s32 %s224, 1
      %p228 = scmp.eq.s32.totalorder %s27, 1
      %p229 = scmp.ne.s32.totalorder %s224, %s226
      %p230 = scmp.eq.s32.totalorder %s27, 0
      %p231 = por %p229, %p230
      %p232 = scmp.ne.s32.totalorder %s224, %s226
      %p233 = scmp.eq.s32.totalorder %s32, 1
      %p234 = por %p232, %p233
      %p235 = scmp.ne.s32.totalorder %s226, %s227
      %p236 = scmp.eq.s32.totalorder %s32, 0
      %p237 = por %p235, %p236
      %p238 = scmp.ne.s32.totalorder %s226, %s227
      %p239 = scmp.eq.s32.totalorder %s33, 1
      %p240 = por %p238, %p239
      %p242 = scmp.ne.s32.totalorder %s227, %s241
      %p243 = scmp.eq.s32.totalorder %s33, 0
      %p244 = por %p242, %p243
      %s246 = sadd.s32 %s245, 1
      %p249 = scmp.eq.s32.totalorder %s27, 1
      %p250 = scmp.ne.s32.totalorder %s245, %s247
      %p251 = scmp.eq.s32.totalorder %s27, 0
      %p252 = por %p250, %p251
      %p253 = scmp.ne.s32.totalorder %s245, %s247
      %p254 = scmp.eq.s32.totalorder %s32, 1
      %p255 = por %p253, %p254
      %p256 = scmp.ne.s32.totalorder %s247, %s248
      %p257 = scmp.eq.s32.totalorder %s32, 0
      %p258 = por %p256, %p257
      %p259 = scmp.ne.s32.totalorder %s247, %s248
      %p260 = scmp.eq.s32.totalorder %s33, 1
      %p261 = por %p259, %p260
      %p263 = scmp.ne.s32.totalorder %s248, %s262
      %p264 = scmp.eq.s32.totalorder %s33, 0
      %p265 = por %p263, %p264
      %s267 = sadd.s32 %s266, 1
      %p270 = scmp.eq.s32.totalorder %s27, 1
      %p271 = scmp.ne.s32.totalorder %s266, %s268
      %p272 = scmp.eq.s32.totalorder %s27, 0
      %p273 = por %p271, %p272
      %p274 = scmp.ne.s32.totalorder %s266, %s268
      %p275 = scmp.eq.s32.totalorder %s32, 1
      %p276 = por %p274, %p275
      %p277 = scmp.ne.s32.totalorder %s268, %s269
      %p278 = scmp.eq.s32.totalorder %s32, 0
      %p279 = por %p277, %p278
      %p280 = scmp.ne.s32.totalorder %s268, %s269
      %p281 = scmp.eq.s32.totalorder %s33, 1
      %p282 = por %p280, %p281
      %p284 = scmp.ne.s32.totalorder %s269, %s283
      %p285 = scmp.eq.s32.totalorder %s33, 0
      %p286 = por %p284, %p285
      %s288 = sadd.s32 %s287, 1
      %p291 = scmp.eq.s32.totalorder %s27, 1
      %p292 = scmp.ne.s32.totalorder %s287, %s289
      %p293 = scmp.eq.s32.totalorder %s27, 0
      %p294 = por %p292, %p293
      %p295 = scmp.ne.s32.totalorder %s287, %s289
      %p296 = scmp.eq.s32.totalorder %s32, 1
      %p297 = por %p295, %p296
      %p298 = scmp.ne.s32.totalorder %s289, %s290
      %p299 = scmp.eq.s32.totalorder %s32, 0
      %p300 = por %p298, %p299
      %p301 = scmp.ne.s32.totalorder %s289, %s290
      %p302 = scmp.eq.s32.totalorder %s33, 1
      %p303 = por %p301, %p302
      %p305 = scmp.ne.s32.totalorder %s290, %s304
      %p306 = scmp.eq.s32.totalorder %s33, 0
      %p307 = por %p305, %p306
      %s309 = sadd.s32 %s308, 1
      %p312 = scmp.eq.s32.totalorder %s27, 1
      %p313 = scmp.ne.s32.totalorder %s308, %s310
      %p314 = scmp.eq.s32.totalorder %s27, 0
      %p315 = por %p313, %p314
      %p316 = scmp.ne.s32.totalorder %s308, %s310
      %p317 = scmp.eq.s32.totalorder %s32, 1
      %p318 = por %p316, %p317
      %p319 = scmp.ne.s32.totalorder %s310, %s311
      %p320 = scmp.eq.s32.totalorder %s32, 0
      %p321 = por %p319, %p320
      %p322 = scmp.ne.s32.totalorder %s310, %s311
      %p323 = scmp.eq.s32.totalorder %s33, 1
      %p324 = por %p322, %p323
      %p326 = scmp.ne.s32.totalorder %s311, %s325
      %p327 = scmp.eq.s32.totalorder %s33, 0
      %p328 = por %p326, %p327
      %s330 = sadd.s32 %s329, 1
      %p333 = scmp.eq.s32.totalorder %s27, 1
      %p334 = scmp.ne.s32.totalorder %s329, %s331
      %p335 = scmp.eq.s32.totalorder %s27, 0
      %p336 = por %p334, %p335
      %p337 = scmp.ne.s32.totalorder %s329, %s331
      %p338 = scmp.eq.s32.totalorder %s32, 1
      %p339 = por %p337, %p338
      %p340 = scmp.ne.s32.totalorder %s331, %s332
      %p341 = scmp.eq.s32.totalorder %s32, 0
      %p342 = por %p340, %p341
      %p343 = scmp.ne.s32.totalorder %s331, %s332
      %p344 = scmp.eq.s32.totalorder %s33, 1
      %p345 = por %p343, %p344
      %p347 = scmp.ne.s32.totalorder %s332, %s346
      %p348 = scmp.eq.s32.totalorder %s33, 0
      %p349 = por %p347, %p348
      %s351 = sadd.s32 %s350, 1
      %p354 = scmp.eq.s32.totalorder %s27, 1
      %p355 = scmp.ne.s32.totalorder %s350, %s352
      %p356 = scmp.eq.s32.totalorder %s27, 0
      %p357 = por %p355, %p356
      %p358 = scmp.ne.s32.totalorder %s350, %s352
      %p359 = scmp.eq.s32.totalorder %s32, 1
      %p360 = por %p358, %p359
      %p361 = scmp.ne.s32.totalorder %s352, %s353
      %p362 = scmp.eq.s32.totalorder %s32, 0
      %p363 = por %p361, %p362
      %p364 = scmp.ne.s32.totalorder %s352, %s353
      %p365 = scmp.eq.s32.totalorder %s33, 1
      %p366 = por %p364, %p365
      %p368 = scmp.ne.s32.totalorder %s353, %s367
      %p369 = scmp.eq.s32.totalorder %s33, 0
      %p370 = por %p368, %p369
      %s371 = ssub.s32 %s27, %s34
      %p372 = scmp.eq.s32.totalorder %s371, 0
      %s374 = sadd.s32 %s373, 1
      %s375 = scalar_select %p372, %s373, %s374
      %p378 = pneg %p372
      %p379 = scmp.eq.s32.totalorder %s27, 1
      %p380 = por %p378, %p379
      %p381 = scmp.ne.s32.totalorder %s373, %s376
      %p382 = scmp.eq.s32.totalorder %s27, 0
      %p383 = por %p381, %p382
      %p384 = scmp.ne.s32.totalorder %s373, %s376
      %p385 = scmp.eq.s32.totalorder %s32, 1
      %p386 = por %p384, %p385
      %p387 = scmp.ne.s32.totalorder %s376, %s377
      %p388 = scmp.eq.s32.totalorder %s32, 0
      %p389 = por %p387, %p388
      %p390 = scmp.ne.s32.totalorder %s376, %s377
      %p391 = scmp.eq.s32.totalorder %s33, 1
      %p392 = por %p390, %p391
      %p394 = scmp.ne.s32.totalorder %s377, %s393
      %p395 = scmp.eq.s32.totalorder %s33, 0
      %p396 = por %p394, %p395
      %p397 = scmp.le.s32.totalorder 1, %s27
      %p398 = scmp.lt.s32.totalorder %s27, 3
      %p399 = pnand %p397, %p398
      %p400 = pneg %p399
      // Predicated region
      $region9: #{tpu_custom_call.1} parent=5 // pred_check
        _
      $region10: #{tpu_custom_call.1} parent=5 // pred_check_branch
        %402 = sbr.rel (%p399) target = $region12
      $region11: #{tpu_custom_call.1} parent=5 // pred_region
        %s403 = ssub.s32 %s27, 1
        // Predicated region
        $region13: #{tpu_custom_call.1} parent=11 // pred_check
          %p404 = pneg %p48
        $region14: #{tpu_custom_call.1} parent=11 // pred_check_branch
          %406 = sbr.rel (%p404) target = $region16
        $region15: #{tpu_custom_call.1} parent=11 // pred_region
          _
        $region16: #{tpu_custom_call.1} parent=11 // pred_fallthru
          _
        // Predicated region
        $region17: #{tpu_custom_call.1} parent=11 // pred_check
          %p407 = pneg %p69
        $region18: #{tpu_custom_call.1} parent=11 // pred_check_branch
          %409 = sbr.rel (%p407) target = $region20
        $region19: #{tpu_custom_call.1} parent=11 // pred_region
          _
        $region20: #{tpu_custom_call.1} parent=11 // pred_fallthru
          _
        // Predicated region
        $region21: #{tpu_custom_call.1} parent=11 // pred_check
          %p410 = pneg %p90
        $region22: #{tpu_custom_call.1} parent=11 // pred_check_branch
          %412 = sbr.rel (%p410) target = $region24
        $region23: #{tpu_custom_call.1} parent=11 // pred_region
          _
        $region24: #{tpu_custom_call.1} parent=11 // pred_fallthru
          _
        // Predicated region
        $region25: #{tpu_custom_call.1} parent=11 // pred_check
          %p413 = pneg %p111
        $region26: #{tpu_custom_call.1} parent=11 // pred_check_branch
          %415 = sbr.rel (%p413) target = $region28
        $region27: #{tpu_custom_call.1} parent=11 // pred_region
          _
        $region28: #{tpu_custom_call.1} parent=11 // pred_fallthru
          _
        // Predicated region
        $region29: #{tpu_custom_call.1} parent=11 // pred_check
          %p416 = pneg %p132
        $region30: #{tpu_custom_call.1} parent=11 // pred_check_branch
          %418 = sbr.rel (%p416) target = $region32
        $region31: #{tpu_custom_call.1} parent=11 // pred_region
          _
        $region32: #{tpu_custom_call.1} parent=11 // pred_fallthru
          _
        // Predicated region
        $region33: #{tpu_custom_call.1} parent=11 // pred_check
          %p419 = pneg %p153
        $region34: #{tpu_custom_call.1} parent=11 // pred_check_branch
          %421 = sbr.rel (%p419) target = $region36
        $region35: #{tpu_custom_call.1} parent=11 // pred_region
          _
        $region36: #{tpu_custom_call.1} parent=11 // pred_fallthru
          _
        // Predicated region
        $region37: #{tpu_custom_call.1} parent=11 // pred_check
          %p422 = pneg %p174
        $region38: #{tpu_custom_call.1} parent=11 // pred_check_branch
          %424 = sbr.rel (%p422) target = $region40
        $region39: #{tpu_custom_call.1} parent=11 // pred_region
          _
        $region40: #{tpu_custom_call.1} parent=11 // pred_fallthru
          _
        // Predicated region
        $region41: #{tpu_custom_call.1} parent=11 // pred_check
          %p425 = pneg %p195
        $region42: #{tpu_custom_call.1} parent=11 // pred_check_branch
          %427 = sbr.rel (%p425) target = $region44
        $region43: #{tpu_custom_call.1} parent=11 // pred_region
          _
        $region44: #{tpu_custom_call.1} parent=11 // pred_fallthru
          _
        // Predicated region
        $region45: #{tpu_custom_call.1} parent=11 // pred_check
          %p428 = pneg %p216
        $region46: #{tpu_custom_call.1} parent=11 // pred_check_branch
          %430 = sbr.rel (%p428) target = $region48
        $region47: #{tpu_custom_call.1} parent=11 // pred_region
          _
        $region48: #{tpu_custom_call.1} parent=11 // pred_fallthru
          _
        // Predicated region
        $region49: #{tpu_custom_call.1} parent=11 // pred_check
          %p431 = pneg %p237
        $region50: #{tpu_custom_call.1} parent=11 // pred_check_branch
          %433 = sbr.rel (%p431) target = $region52
        $region51: #{tpu_custom_call.1} parent=11 // pred_region
          _
        $region52: #{tpu_custom_call.1} parent=11 // pred_fallthru
          _
        // Predicated region
        $region53: #{tpu_custom_call.1} parent=11 // pred_check
          %p434 = pneg %p258
        $region54: #{tpu_custom_call.1} parent=11 // pred_check_branch
          %436 = sbr.rel (%p434) target = $region56
        $region55: #{tpu_custom_call.1} parent=11 // pred_region
          _
        $region56: #{tpu_custom_call.1} parent=11 // pred_fallthru
          _
        // Predicated region
        $region57: #{tpu_custom_call.1} parent=11 // pred_check
          %p437 = pneg %p279
        $region58: #{tpu_custom_call.1} parent=11 // pred_check_branch
          %439 = sbr.rel (%p437) target = $region60
        $region59: #{tpu_custom_call.1} parent=11 // pred_region
          _
        $region60: #{tpu_custom_call.1} parent=11 // pred_fallthru
          _
        // Predicated region
        $region61: #{tpu_custom_call.1} parent=11 // pred_check
          %p440 = pneg %p300
        $region62: #{tpu_custom_call.1} parent=11 // pred_check_branch
          %442 = sbr.rel (%p440) target = $region64
        $region63: #{tpu_custom_call.1} parent=11 // pred_region
          _
        $region64: #{tpu_custom_call.1} parent=11 // pred_fallthru
          _
        // Predicated region
        $region65: #{tpu_custom_call.1} parent=11 // pred_check
          %p443 = pneg %p321
        $region66: #{tpu_custom_call.1} parent=11 // pred_check_branch
          %445 = sbr.rel (%p443) target = $region68
        $region67: #{tpu_custom_call.1} parent=11 // pred_region
          _
        $region68: #{tpu_custom_call.1} parent=11 // pred_fallthru
          _
        // Predicated region
        $region69: #{tpu_custom_call.1} parent=11 // pred_check
          %p446 = pneg %p342
        $region70: #{tpu_custom_call.1} parent=11 // pred_check_branch
          %448 = sbr.rel (%p446) target = $region72
        $region71: #{tpu_custom_call.1} parent=11 // pred_region
          _
        $region72: #{tpu_custom_call.1} parent=11 // pred_fallthru
          _
      $region12: #{tpu_custom_call.1} parent=5 // pred_fallthru
        _
      %p449 = scmp.lt.s32.totalorder %s27, 2
      // Predicated region
      $region73: #{tpu_custom_call.1} parent=5 // pred_check
        %p450 = pneg %p449
      $region74: #{tpu_custom_call.1} parent=5 // pred_check_branch
        %452 = sbr.rel (%p450) target = $region76
      $region75: #{tpu_custom_call.1} parent=5 // pred_region
        _
      $region76: #{tpu_custom_call.1} parent=5 // pred_fallthru
        _
      %p453 = scmp.le.s32.totalorder 1, %s27
      %p454 = scmp.lt.s32.totalorder %s27, 3
      %p455 = pnand %p453, %p454
      %p456 = pneg %p455
      // Predicated region
      $region77: #{tpu_custom_call.1} parent=5 // pred_check
        _
      $region78: #{tpu_custom_call.1} parent=5 // pred_check_branch
        %458 = sbr.rel (%p455) target = $region80
      $region79: #{tpu_custom_call.1} parent=5 // pred_region
        %s459 = ssub.s32 %s27, 1
        %p460 = pneg %p48
        %p461 = pneg %p45
        %p462 = pneg %p69
        %p463 = pneg %p66
        %p464 = pneg %p90
        %p465 = pneg %p87
        %p466 = pneg %p111
        %p467 = pneg %p108
        %p468 = pneg %p132
        %p469 = pneg %p129
        %p470 = pneg %p153
        %p471 = pneg %p150
        %p472 = pneg %p174
        %p473 = pneg %p171
        %p474 = pneg %p195
        %p475 = pneg %p192
        %p476 = pneg %p216
        %p477 = pneg %p213
        %p478 = pneg %p237
        %p479 = pneg %p234
        %p480 = pneg %p258
        %p481 = pneg %p255
        %p482 = pneg %p279
        %p483 = pneg %p276
        %p484 = pneg %p300
        %p485 = pneg %p297
        %p486 = pneg %p321
        %p487 = pneg %p318
        %p488 = pneg %p342
        %p489 = pneg %p339
        %p490 = pneg %p363
        %p491 = pneg %p360
        %p492 = pneg %p389
        %p493 = pneg %p386
        %s494 = sand.u32 %s376, 1
        %s495 = scalar_lea.sflag [#allocation5], %s494
        %s496 = sand.u32 %s376, 1
        %s497 = scalar_lea.vmem [#allocation4], %s496
        %v499 = vld [vmem:[%s1] sm:$0xff]
        %v500 = vld [vmem:[%s1 + $0x8] sm:$0xff]
        %v501 = vld [vmem:[%s0] sm:$0xf]
        %v502 = vld [vmem:[%s2] sm:$0xff]
        %v503 = vld [vmem:[%s2 + $0x8] sm:$0xff]
        %505 = vset.pattern.permute.xlu0 0
        %506 = vperm.xlu0 %505, %v502
        %v507 = vpop.permute.xlu0 %506
        %510 = vset.pattern.permute.xlu0 0
        %511 = vperm.xlu0 %510, %v503
        %v512 = vpop.permute.xlu0 %511
        %vm514 = vcmask 31744
        %v516 = vsel %vm514, %v499, 0
        %v519 = vsel %vm514, %v500, 0
        %vm521 = vcmask 1043456
        %v523 = vsel %vm521, %v501, 0
        %525 = vmatprep.subr.mxu0 0.0
        %526 = vmatpush1.msra.mxu0 %v523
        %527 = vmatprep.subr.mxu0 0.0
        %528 = vmatpush1.msra.mxu0 0.0
        %529 = vmatprep.subr.mxu0 0.0
        %530 = vmatpush1.msra.mxu0 0.0
        %531 = vmatprep.subr.mxu0 0.0
        %532 = vmatpush1.msra.mxu0 0.0
        %533 = vmatprep.subr.mxu0 0.0
        %534 = vmatpush1.msra.mxu0 0.0
        %535 = vmatprep.subr.mxu0 0.0
        %536 = vmatpush1.msra.mxu0 0.0
        %537 = vmatprep.subr.mxu0 0.0
        %538 = vmatpush1.msra.mxu0 0.0
        %539 = vmatprep.subr.mxu0 0.0
        %540 = vmatpush1.msra.mxu0 0.0
        %541 = vmatprep.subr.mxu0 0.0
        %542 = vmatpush1.msra.mxu0 0.0
        %543 = vmatprep.subr.mxu0 0.0
        %544 = vmatpush1.msra.mxu0 0.0
        %545 = vmatprep.subr.mxu0 0.0
        %546 = vmatpush1.msra.mxu0 0.0
        %547 = vmatprep.subr.mxu0 0.0
        %548 = vmatpush1.msra.mxu0 0.0
        %549 = vmatprep.subr.mxu0 0.0
        %550 = vmatpush1.msra.mxu0 0.0
        %551 = vmatprep.subr.mxu0 0.0
        %552 = vmatpush1.msra.mxu0 0.0
        %553 = vmatprep.subr.mxu0 0.0
        %554 = vmatpush1.msra.mxu0 0.0
        %555 = vmatprep.subr.mxu0 0.0
        %556 = vmatpush1.msra.mxu0 0.0
        %557 = vmatprep.subr.mxu0 0.0
        %558 = vmatpush1.msra.mxu0 0.0
        %559 = vmatprep.subr.mxu0 0.0
        %560 = vmatpush1.msra.mxu0 0.0
        %561 = vmatprep.subr.mxu0 0.0
        %562 = vmatpush1.msra.mxu0 0.0
        %563 = vmatprep.subr.mxu0 0.0
        %564 = vmatpush1.msra.mxu0 0.0
        %565 = vmatprep.subr.mxu0 0.0
        %566 = vmatpush1.msra.mxu0 0.0
        %567 = vmatprep.subr.mxu0 0.0
        %568 = vmatpush1.msra.mxu0 0.0
        %569 = vmatprep.subr.mxu0 0.0
        %570 = vmatpush1.msra.mxu0 0.0
        %571 = vmatprep.subr.mxu0 0.0
        %572 = vmatpush1.msra.mxu0 0.0
        %573 = vmatprep.subr.mxu0 0.0
        %574 = vmatpush1.msra.mxu0 0.0
        %575 = vmatprep.subr.mxu0 0.0
        %576 = vmatpush1.msra.mxu0 0.0
        %577 = vmatprep.subr.mxu0 0.0
        %578 = vmatpush1.msra.mxu0 0.0
        %579 = vmatprep.subr.mxu0 0.0
        %580 = vmatpush1.msra.mxu0 0.0
        %581 = vmatprep.subr.mxu0 0.0
        %582 = vmatpush1.msra.mxu0 0.0
        %583 = vmatprep.subr.mxu0 0.0
        %584 = vmatpush1.msra.mxu0 0.0
        %585 = vmatprep.subr.mxu0 0.0
        %586 = vmatpush1.msra.mxu0 0.0
        %587 = vmatprep.subr.mxu0 0.0
        %588 = vmatpush1.msra.mxu0 0.0
        %589 = vmatprep.mubr.f32.mxu0 0.0
        %590 = vmatmul.mubr.f32.gmra.mrb[0].mxu0 %v516
        %v591 = vpop.f32.mrb[0].mxu0
        %v592 = vadd.f32 %v507, %v591
        %v593 = vpop.f32.mrb[0].mxu0
        %594 = vmatprep.mubr.f32.mxu0 0.0
        %595 = vmatmul.mubr.f32.gmra.mrb[0].mxu0 %v519
        %v596 = vpop.f32.mrb[0].mxu0
        %v597 = vadd.f32 %v512, %v596
        %v598 = vpop.f32.mrb[0].mxu0
        %599 = vdwg.mxu0
        %v600 = vadd.f32 %v592, %v597
        %v601 = vrot.slane %v600, 4
        %v602 = vadd.f32 %v600, %v601
        %v603 = vrot.slane %v602, 2
        %v604 = vadd.f32 %v602, %v603
        %v605 = vrot.slane %v604, 1
        %v606 = vadd.f32 %v604, %v605
        %v607 = vrcp.pop 16.0
        %v608 = vmul.f32 %v606, %v607
        %v609 = vsub.f32 %v592, %v608
        %v610 = vsub.f32 %v597, %v608
        %v611 = vmul.f32 %v609, %v609
        %v612 = vmul.f32 %v610, %v610
        %v613 = vadd.f32 %v611, %v612
        %v614 = vrot.slane %v613, 4
        %v615 = vadd.f32 %v613, %v614
        %v616 = vrot.slane %v615, 2
        %v617 = vadd.f32 %v615, %v616
        %v618 = vrot.slane %v617, 1
        %v619 = vadd.f32 %v617, %v618
        %v620 = vmul.f32 %v619, %v607
        %v621 = vadd.f32 %v620, 1e-05
        %v622 = vrsqrt.pop %v621
        %v623 = vmul.f32 %v609, %v622
        %v624 = vmul.f32 %v610, %v622
        %v625 = vld [vmem:[%s3] sm:$0xff]
        %v626 = vld [vmem:[%s3 + $0x8] sm:$0xff]
        %628 = vset.pattern.permute.xlu0 0
        %629 = vperm.xlu0 %628, %v625
        %v630 = vpop.permute.xlu0 %629
        %633 = vset.pattern.permute.xlu0 0
        %634 = vperm.xlu0 %633, %v626
        %v635 = vpop.permute.xlu0 %634
        %v637 = vmul.f32 %v623, %v630
        %v638 = vmul.f32 %v624, %v635
        %v639 = vld [vmem:[%s4] sm:$0xff]
        %v640 = vld [vmem:[%s4 + $0x8] sm:$0xff]
        %642 = vset.pattern.permute.xlu0 0
        %643 = vperm.xlu0 %642, %v639
        %v644 = vpop.permute.xlu0 %643
        %647 = vset.pattern.permute.xlu0 0
        %648 = vperm.xlu0 %647, %v640
        %v649 = vpop.permute.xlu0 %648
        %v651 = vadd.f32 %v637, %v644
        %v652 = vadd.f32 %v638, %v649
        %v653 = vmax.f32 %v651, 0.0
        %v654 = vmax.f32 %v652, 0.0
        %p655 = scmp.eq.s32.totalorder %s32, 0
        // Predicated region
        $region81: #{tpu_custom_call.1} parent=79 // pred_check
          %p656 = pneg %p655
        $region82: #{tpu_custom_call.1} parent=79 // pred_check_branch
          %658 = sbr.rel (%p656) target = $region84
        $region83: #{tpu_custom_call.1} parent=79 // pred_region
          %659 = vst [vmem:[#allocation2] sm:$0xff] %v653
          %660 = vst [vmem:[#allocation2 + $0x8] sm:$0xff] %v654
        $region84: #{tpu_custom_call.1} parent=79 // pred_fallthru
          _
        %v661 = vld [vmem:[#allocation2] sm:$0xff]
        %v662 = vld [vmem:[#allocation2 + $0x8] sm:$0xff]
        %v663 = vpack.c.bf16 %v662, %v661
        %v664 = vld [vmem:[%s5] sm:$0xf]
        %v665 = vld [vmem:[%s5 + $0x4] sm:$0xf]
        %v666 = vld [vmem:[%s5 + $0x8] sm:$0xf]
        %v667 = vld [vmem:[%s5 + $0xc] sm:$0xf]
        %v668 = vld [vmem:[%s5 + $0x10] sm:$0xf]
        %v669 = vld [vmem:[%s5 + $0x14] sm:$0xf]
        %v670 = vld [vmem:[%s5 + $0x18] sm:$0xf]
        %v671 = vld [vmem:[%s5 + $0x1c] sm:$0xf]
        %v672 = vld [vmem:[%s5 + $0x20] sm:$0xf]
        %v673 = vld [vmem:[%s5 + $0x24] sm:$0xf]
        %v674 = vld [vmem:[%s5 + $0x28] sm:$0xf]
        %v675 = vld [vmem:[%s5 + $0x2c] sm:$0xf]
        %v676 = vld [vmem:[%s5 + $0x30] sm:$0xf]
        %v677 = vld [vmem:[%s5 + $0x34] sm:$0xf]
        %v678 = vld [vmem:[%s5 + $0x38] sm:$0xf]
        %v679 = vld [vmem:[%s5 + $0x3c] sm:$0xf]
        %v696 = vunpack.c.l.b16 %v664
        %v697 = vunpack.c.l.b16 %v665
        %v698 = vunpack.c.l.b16 %v666
        %v699 = vunpack.c.l.b16 %v667
        %v700 = vunpack.c.l.b16 %v668
        %v701 = vunpack.c.l.b16 %v669
        %v702 = vunpack.c.l.b16 %v670
        %v703 = vunpack.c.l.b16 %v671
        %v704 = vunpack.c.l.b16 %v672
        %v705 = vunpack.c.l.b16 %v673
        %v706 = vunpack.c.l.b16 %v674
        %v707 = vunpack.c.l.b16 %v675
        %v708 = vunpack.c.l.b16 %v676
        %v709 = vunpack.c.l.b16 %v677
        %v710 = vunpack.c.l.b16 %v678
        %v711 = vunpack.c.l.b16 %v679
        %v712 = vpack.c.b16 %v697, %v696
        %v713 = vpack.c.b16 %v699, %v698
        %v714 = vpack.c.b16 %v701, %v700
        %v715 = vpack.c.b16 %v703, %v702
        %v716 = vpack.c.b16 %v705, %v704
        %v717 = vpack.c.b16 %v707, %v706
        %v718 = vpack.c.b16 %v709, %v708
        %v719 = vpack.c.b16 %v711, %v710
        %728 = vmatprep.subr.bf16.mxu0 0
        %729 = vmatpush1.bf16.msra.mxu0 %v712
        %730 = vmatprep.subr.bf16.mxu0 0
        %731 = vmatpush1.bf16.msra.mxu0 %v713
        %732 = vmatprep.subr.bf16.mxu0 0
        %733 = vmatpush1.bf16.msra.mxu0 %v714
        %734 = vmatprep.subr.bf16.mxu0 0
        %735 = vmatpush1.bf16.msra.mxu0 %v715
        %736 = vmatprep.subr.bf16.mxu0 0
        %737 = vmatpush1.bf16.msra.mxu0 %v716
        %738 = vmatprep.subr.bf16.mxu0 0
        %739 = vmatpush1.bf16.msra.mxu0 %v717
        %740 = vmatprep.subr.bf16.mxu0 0
        %741 = vmatpush1.bf16.msra.mxu0 %v718
        %742 = vmatprep.subr.bf16.mxu0 0
        %743 = vmatpush1.bf16.msra.mxu0 %v719
        %744 = vmatprep.subr.bf16.mxu0 0
        %745 = vmatpush1.bf16.msra.mxu0 0
        %746 = vmatprep.subr.bf16.mxu0 0
        %747 = vmatpush1.bf16.msra.mxu0 0
        %748 = vmatprep.subr.bf16.mxu0 0
        %749 = vmatpush1.bf16.msra.mxu0 0
        %750 = vmatprep.subr.bf16.mxu0 0
        %751 = vmatpush1.bf16.msra.mxu0 0
        %752 = vmatprep.subr.bf16.mxu0 0
        %753 = vmatpush1.bf16.msra.mxu0 0
        %754 = vmatprep.subr.bf16.mxu0 0
        %755 = vmatpush1.bf16.msra.mxu0 0
        %756 = vmatprep.subr.bf16.mxu0 0
        %757 = vmatpush1.bf16.msra.mxu0 0
        %758 = vmatprep.subr.bf16.mxu0 0
        %759 = vmatpush1.bf16.msra.mxu0 0
        %760 = vmatprep.mubr.bf16.mxu0 0
        %761 = vmatmul.mubr.bf16.gmra.mrb[0].mxu0 %v663
        %v762 = vpop.f32.mrb[0].mxu0
        %v763 = vadd.f32 0.0, %v762
        %v764 = vpop.f32.mrb[0].mxu0
        %v765 = vpop.f32.mrb[0].mxu0
        %v766 = vadd.f32 0.0, %v765
        %v767 = vpop.f32.mrb[0].mxu0
        %768 = vdwg.mxu0
        %v769 = vxor.u32 %v763, 2147483648
        %v770 = vxor.u32 %v766, 2147483648
        %v771 = vmul.f32 %v769, 1.442695
        %v772 = vpow.pop %v771
        %v773 = vmul.f32 %v770, 1.442695
        %v774 = vpow.pop %v773
        %v775 = vadd.f32 %v772, 1.0
        %v776 = vadd.f32 %v774, 1.0
        %v777 = vrcp.pop %v775
        %v778 = vmul.f32 1.0, %v777
        %v779 = vrcp.pop %v776
        %v780 = vmul.f32 1.0, %v779
        %v781 = vmul.f32 %v763, %v778
        %v782 = vmul.f32 %v766, %v780
        %v783 = vsub.f32 %v763, -5.0
        %v784 = vsub.f32 %v766, -5.0
        %v785 = vmul.f32 %v783, 0.4
        %v786 = vmul.f32 %v784, 0.4
        %v787 = vfloor.f32 %v785
        %v788 = vfloor.f32 %v786
        %v789 = vmax.f32 %v787, 0.0
        %v790 = vmax.f32 %v788, 0.0
        %v791 = vmin.f32 %v789, 3.0
        %v792 = vmin.f32 %v790, 3.0
        %v793 = vsub.f32 %v785, %v791
        %v794 = vsub.f32 %v786, %v792
        %vm795 = vcmp.ge.f32.partialorder %v763, -5.0
        %vm796 = vcmp.ge.f32.partialorder %v766, -5.0
        %vm797 = vcmp.lt.f32.partialorder %v763, 5.0
        %vm798 = vcmp.lt.f32.partialorder %v766, 5.0
        %vm799 = vmand %vm795, %vm797
        %vm800 = vmand %vm796, %vm798
        %vm801 = vcmp.eq.f32.partialorder %v791, 0.0
        %vm802 = vcmp.eq.f32.partialorder %v792, 0.0
        %vm803 = vcmp.eq.f32.partialorder %v791, 1.0
        %vm804 = vcmp.eq.f32.partialorder %v792, 1.0
        %vm805 = vcmp.eq.f32.partialorder %v791, 2.0
        %vm806 = vcmp.eq.f32.partialorder %v792, 2.0
        %v807 = vld [vmem:[%s8 + $0xf] sm:$0x1]
        %v808 = vld [vmem:[%s8 + $0xb] sm:$0x1]
        %v809 = vlaneseq
        %v810 = vshrl.u32 %v809, 7
        %v811 = vsub.s32 0, %v810
        %v812 = vrot.slane %v808, %v811
        %v813 = vlaneseq
        %v814 = vshrl.u32 %v813, 7
        %v815 = vsub.s32 0, %v814
        %v816 = vrot.slane %v807, %v815
        %v817 = vsel %vm805, %v812, %v816
        %v818 = vsel %vm806, %v812, %v816
        %v819 = vld [vmem:[%s8 + $0x7] sm:$0x1]
        %v820 = vlaneseq
        %v821 = vshrl.u32 %v820, 7
        %v822 = vsub.s32 0, %v821
        %v823 = vrot.slane %v819, %v822
        %v824 = vsel %vm803, %v823, %v817
        %v825 = vsel %vm804, %v823, %v818
        %v826 = vld [vmem:[%s8 + $0x3] sm:$0x1]
        %v827 = vlaneseq
        %v828 = vshrl.u32 %v827, 7
        %v829 = vsub.s32 0, %v828
        %v830 = vrot.slane %v826, %v829
        %v831 = vsel %vm801, %v830, %v824
        %v832 = vsel %vm802, %v830, %v825
        %v833 = vmul.f32 %v831, %v793
        %v834 = vmul.f32 %v832, %v794
        %v835 = vld [vmem:[%s8 + $0xe] sm:$0x1]
        %v836 = vld [vmem:[%s8 + $0xa] sm:$0x1]
        %v837 = vlaneseq
        %v838 = vshrl.u32 %v837, 7
        %v839 = vsub.s32 0, %v838
        %v840 = vrot.slane %v836, %v839
        %v841 = vlaneseq
        %v842 = vshrl.u32 %v841, 7
        %v843 = vsub.s32 0, %v842
        %v844 = vrot.slane %v835, %v843
        %v845 = vsel %vm805, %v840, %v844
        %v846 = vsel %vm806, %v840, %v844
        %v847 = vld [vmem:[%s8 + $0x6] sm:$0x1]
        %v848 = vlaneseq
        %v849 = vshrl.u32 %v848, 7
        %v850 = vsub.s32 0, %v849
        %v851 = vrot.slane %v847, %v850
        %v852 = vsel %vm803, %v851, %v845
        %v853 = vsel %vm804, %v851, %v846
        %v854 = vld [vmem:[%s8 + $0x2] sm:$0x1]
        %v855 = vlaneseq
        %v856 = vshrl.u32 %v855, 7
        %v857 = vsub.s32 0, %v856
        %v858 = vrot.slane %v854, %v857
        %v859 = vsel %vm801, %v858, %v852
        %v860 = vsel %vm802, %v858, %v853
        %v861 = vadd.f32 %v833, %v859
        %v862 = vadd.f32 %v834, %v860
        %v863 = vmul.f32 %v861, %v793
        %v864 = vmul.f32 %v862, %v794
        %v865 = vld [vmem:[%s8 + $0xd] sm:$0x1]
        %v866 = vld [vmem:[%s8 + $0x9] sm:$0x1]
        %v867 = vlaneseq
        %v868 = vshrl.u32 %v867, 7
        %v869 = vsub.s32 0, %v868
        %v870 = vrot.slane %v866, %v869
        %v871 = vlaneseq
        %v872 = vshrl.u32 %v871, 7
        %v873 = vsub.s32 0, %v872
        %v874 = vrot.slane %v865, %v873
        %v875 = vsel %vm805, %v870, %v874
        %v876 = vsel %vm806, %v870, %v874
        %v877 = vld [vmem:[%s8 + $0x5] sm:$0x1]
        %v878 = vlaneseq
        %v879 = vshrl.u32 %v878, 7
        %v880 = vsub.s32 0, %v879
        %v881 = vrot.slane %v877, %v880
        %v882 = vsel %vm803, %v881, %v875
        %v883 = vsel %vm804, %v881, %v876
        %v884 = vld [vmem:[%s8 + $0x1] sm:$0x1]
        %v885 = vlaneseq
        %v886 = vshrl.u32 %v885, 7
        %v887 = vsub.s32 0, %v886
        %v888 = vrot.slane %v884, %v887
        %v889 = vsel %vm801, %v888, %v882
        %v890 = vsel %vm802, %v888, %v883
        %v891 = vadd.f32 %v863, %v889
        %v892 = vadd.f32 %v864, %v890
        %v893 = vmul.f32 %v891, %v793
        %v894 = vmul.f32 %v892, %v794
        %v895 = vld [vmem:[%s8 + $0xc] sm:$0x1]
        %v896 = vld [vmem:[%s8 + $0x8] sm:$0x1]
        %v897 = vlaneseq
        %v898 = vshrl.u32 %v897, 7
        %v899 = vsub.s32 0, %v898
        %v900 = vrot.slane %v896, %v899
        %v901 = vlaneseq
        %v902 = vshrl.u32 %v901, 7
        %v903 = vsub.s32 0, %v902
        %v904 = vrot.slane %v895, %v903
        %v905 = vsel %vm805, %v900, %v904
        %v906 = vsel %vm806, %v900, %v904
        %v907 = vld [vmem:[%s8 + $0x4] sm:$0x1]
        %v908 = vlaneseq
        %v909 = vshrl.u32 %v908, 7
        %v910 = vsub.s32 0, %v909
        %v911 = vrot.slane %v907, %v910
        %v912 = vsel %vm803, %v911, %v905
        %v913 = vsel %vm804, %v911, %v906
        %v914 = vld [vmem:[%s8] sm:$0x1]
        %v915 = vlaneseq
        %v916 = vshrl.u32 %v915, 7
        %v917 = vsub.s32 0, %v916
        %v918 = vrot.slane %v914, %v917
        %v919 = vsel %vm801, %v918, %v912
        %v920 = vsel %vm802, %v918, %v913
        %v921 = vadd.f32 %v893, %v919
        %v922 = vadd.f32 %v894, %v920
        %v923 = vsel %vm799, %v921, 0.0
        %v924 = vsel %vm800, %v922, 0.0
        %v925 = vld [vmem:[%s9] sm:$0x1]
        %v927 = vlaneseq
        %v928 = vshrl.u32 %v927, 7
        %v929 = vsub.s32 0, %v928
        %v930 = vrot.slane %v925, %v929
        %v932 = vmul.f32 %v930, %v781
        %v933 = vmul.f32 %v930, %v782
        %v934 = vadd.f32 %v932, %v923
        %v935 = vadd.f32 %v933, %v924
        %v936 = vld [vmem:[%s10] sm:$0xff]
        %v937 = vld [vmem:[%s10 + $0x8] sm:$0xff]
        %939 = vset.pattern.permute.xlu0 0
        %940 = vperm.xlu0 %939, %v936
        %v941 = vpop.permute.xlu0 %940
        %944 = vset.pattern.permute.xlu0 0
        %945 = vperm.xlu0 %944, %v937
        %v946 = vpop.permute.xlu0 %945
        %v948 = vmul.f32 %v934, %v941
        %v949 = vmul.f32 %v935, %v946
        %v950 = vadd.f32 %v948, %v949
        %v951 = vrot.slane %v950, 4
        %v952 = vadd.f32 %v950, %v951
        %v953 = vrot.slane %v952, 2
        %v954 = vadd.f32 %v952, %v953
        %v955 = vrot.slane %v954, 1
        %v956 = vadd.f32 %v954, %v955
        %v957 = vld [vmem:[%s7] sm:$0x7]
        %vm958 = vcmp.gt.f32.partialorder %v957, 0.0
        %v959 = vsel %vm958, %v956, -1e+30
        %vm960 = vcmask 1042432
        %v961 = vsel %vm960, %v959, -inf
        %962 = vmax.xlane.f32.xlu0 %v961
        %v963 = vpop.xlane.xlu0 %962
        %v964 = vmul.f32 %v957, %v963
        %v965 = vsel %vm960, %v964, 0.0
        %v966 = vrot.slane %v965, 4
        %v967 = vadd.f32 %v965, %v966
        %v968 = vrot.slane %v967, 2
        %v969 = vadd.f32 %v967, %v968
        %v970 = vrot.slane %v969, 1
        %v971 = vadd.f32 %v969, %v970
        %v972 = vsub.f32 %v956, %v971
        %v973 = vmul.f32 %v972, 1.442695
        %v974 = vpow.pop %v973
        %v975 = vmul.f32 %v957, %v974
        %v976 = vsel %vm960, %v975, 0.0
        %977 = vadd.xlane.f32.xlu0 %v976
        %v978 = vpop.xlane.xlu0 %977
        %v979 = vmul.f32 %v957, %v978
        %v980 = vsel %vm960, %v979, 0.0
        %v981 = vrot.slane %v980, 4
        %v982 = vadd.f32 %v980, %v981
        %v983 = vrot.slane %v982, 2
        %v984 = vadd.f32 %v982, %v983
        %v985 = vrot.slane %v984, 1
        %v986 = vadd.f32 %v984, %v985
        %vm987 = vcmp.gt.f32.partialorder %v986, 0.0
        %v988 = vsel %vm987, %v986, 1.0
        %v989 = vrcp.pop %v988
        %v990 = vmul.f32 %v974, %v989
        %v991 = vsel %vm987, %v990, 0.0
        %v992 = vmul.f32 %v934, %v991
        %v993 = vmul.f32 %v935, %v991
        %v994 = vpack.c.bf16 %v993, %v992
        %v995 = vld [vmem:[%s6] sm:$0xf]
        %v996 = vld [vmem:[%s6 + $0x4] sm:$0xf]
        %v997 = vld [vmem:[%s6 + $0x8] sm:$0xf]
        %v998 = vld [vmem:[%s6 + $0xc] sm:$0xf]
        %v999 = vld [vmem:[%s6 + $0x10] sm:$0xf]
        %v1000 = vld [vmem:[%s6 + $0x14] sm:$0xf]
        %v1001 = vld [vmem:[%s6 + $0x18] sm:$0xf]
        %v1002 = vld [vmem:[%s6 + $0x1c] sm:$0xf]
        %v1003 = vld [vmem:[%s6 + $0x20] sm:$0xf]
        %v1004 = vld [vmem:[%s6 + $0x24] sm:$0xf]
        %v1005 = vld [vmem:[%s6 + $0x28] sm:$0xf]
        %v1006 = vld [vmem:[%s6 + $0x2c] sm:$0xf]
        %v1007 = vld [vmem:[%s6 + $0x30] sm:$0xf]
        %v1008 = vld [vmem:[%s6 + $0x34] sm:$0xf]
        %v1009 = vld [vmem:[%s6 + $0x38] sm:$0xf]
        %v1010 = vld [vmem:[%s6 + $0x3c] sm:$0xf]
        %v1027 = vunpack.c.l.b16 %v995
        %v1028 = vunpack.c.l.b16 %v996
        %v1029 = vunpack.c.l.b16 %v997
        %v1030 = vunpack.c.l.b16 %v998
        %v1031 = vunpack.c.l.b16 %v999
        %v1032 = vunpack.c.l.b16 %v1000
        %v1033 = vunpack.c.l.b16 %v1001
        %v1034 = vunpack.c.l.b16 %v1002
        %v1035 = vunpack.c.l.b16 %v1003
        %v1036 = vunpack.c.l.b16 %v1004
        %v1037 = vunpack.c.l.b16 %v1005
        %v1038 = vunpack.c.l.b16 %v1006
        %v1039 = vunpack.c.l.b16 %v1007
        %v1040 = vunpack.c.l.b16 %v1008
        %v1041 = vunpack.c.l.b16 %v1009
        %v1042 = vunpack.c.l.b16 %v1010
        %v1043 = vpack.c.b16 %v1028, %v1027
        %v1044 = vpack.c.b16 %v1030, %v1029
        %v1045 = vpack.c.b16 %v1032, %v1031
        %v1046 = vpack.c.b16 %v1034, %v1033
        %v1047 = vpack.c.b16 %v1036, %v1035
        %v1048 = vpack.c.b16 %v1038, %v1037
        %v1049 = vpack.c.b16 %v1040, %v1039
        %v1050 = vpack.c.b16 %v1042, %v1041
        %1059 = vmatprep.subr.bf16.mxu0 0
        %1060 = vmatpush1.bf16.msra.mxu0 %v1043
        %1061 = vmatprep.subr.bf16.mxu0 0
        %1062 = vmatpush1.bf16.msra.mxu0 %v1044
        %1063 = vmatprep.subr.bf16.mxu0 0
        %1064 = vmatpush1.bf16.msra.mxu0 %v1045
        %1065 = vmatprep.subr.bf16.mxu0 0
        %1066 = vmatpush1.bf16.msra.mxu0 %v1046
        %1067 = vmatprep.subr.bf16.mxu0 0
        %1068 = vmatpush1.bf16.msra.mxu0 %v1047
        %1069 = vmatprep.subr.bf16.mxu0 0
        %1070 = vmatpush1.bf16.msra.mxu0 %v1048
        %1071 = vmatprep.subr.bf16.mxu0 0
        %1072 = vmatpush1.bf16.msra.mxu0 %v1049
        %1073 = vmatprep.subr.bf16.mxu0 0
        %1074 = vmatpush1.bf16.msra.mxu0 %v1050
        %1075 = vmatprep.subr.bf16.mxu0 0
        %1076 = vmatpush1.bf16.msra.mxu0 0
        %1077 = vmatprep.subr.bf16.mxu0 0
        %1078 = vmatpush1.bf16.msra.mxu0 0
        %1079 = vmatprep.subr.bf16.mxu0 0
        %1080 = vmatpush1.bf16.msra.mxu0 0
        %1081 = vmatprep.subr.bf16.mxu0 0
        %1082 = vmatpush1.bf16.msra.mxu0 0
        %1083 = vmatprep.subr.bf16.mxu0 0
        %1084 = vmatpush1.bf16.msra.mxu0 0
        %1085 = vmatprep.subr.bf16.mxu0 0
        %1086 = vmatpush1.bf16.msra.mxu0 0
        %1087 = vmatprep.subr.bf16.mxu0 0
        %1088 = vmatpush1.bf16.msra.mxu0 0
        %1089 = vmatprep.subr.bf16.mxu0 0
        %1090 = vmatpush1.bf16.msra.mxu0 0
        %1091 = vmatprep.mubr.bf16.mxu0 0
        %1092 = vmatmul.mubr.bf16.gmra.mrb[0].mxu0 %v994
        %v1093 = vpop.f32.mrb[0].mxu0
        %v1094 = vadd.f32 0.0, %v1093
        %v1095 = vpop.f32.mrb[0].mxu0
        %v1096 = vpop.f32.mrb[0].mxu0
        %v1097 = vadd.f32 0.0, %v1096
        %v1098 = vpop.f32.mrb[0].mxu0
        %1099 = vdwg.mxu0
        %v1100 = vld [vmem:[%s11] sm:$0xff]
        %v1101 = vld [vmem:[%s11 + $0x8] sm:$0xff]
        %v1102 = vld [vmem:[%s11 + $0x10] sm:$0xff]
        %v1103 = vld [vmem:[%s11 + $0x18] sm:$0xff]
        %v1104 = vld [vmem:[%s11 + $0x20] sm:$0xff]
        %v1105 = vld [vmem:[%s11 + $0x28] sm:$0xff]
        %v1106 = vld [vmem:[%s13] sm:$0xff]
        %v1107 = vld [vmem:[%s13 + $0x8] sm:$0xff]
        %v1108 = vld [vmem:[%s13 + $0x10] sm:$0xff]
        %v1109 = vld [vmem:[%s13 + $0x18] sm:$0xff]
        %v1110 = vld [vmem:[%s13 + $0x20] sm:$0xff]
        %v1111 = vld [vmem:[%s13 + $0x28] sm:$0xff]
        %1113 = vset.pattern.permute.xlu0 0
        %1114 = vperm.xlu0 %1113, %v1106
        %v1115 = vpop.permute.xlu0 %1114
        %1118 = vset.pattern.permute.xlu0 0
        %1119 = vperm.xlu0 %1118, %v1107
        %v1120 = vpop.permute.xlu0 %1119
        %1123 = vset.pattern.permute.xlu0 0
        %1124 = vperm.xlu0 %1123, %v1108
        %v1125 = vpop.permute.xlu0 %1124
        %1128 = vset.pattern.permute.xlu0 0
        %1129 = vperm.xlu0 %1128, %v1109
        %v1130 = vpop.permute.xlu0 %1129
        %1133 = vset.pattern.permute.xlu0 0
        %1134 = vperm.xlu0 %1133, %v1110
        %v1135 = vpop.permute.xlu0 %1134
        %1138 = vset.pattern.permute.xlu0 0
        %1139 = vperm.xlu0 %1138, %v1111
        %v1140 = vpop.permute.xlu0 %1139
        %vm1142 = vcmask 130048
        %v1144 = vsel %vm1142, %v1100, 0
        %v1147 = vsel %vm1142, %v1101, 0
        %v1150 = vsel %vm1142, %v1102, 0
        %v1153 = vsel %vm1142, %v1103, 0
        %v1156 = vsel %vm1142, %v1104, 0
        %v1159 = vsel %vm1142, %v1105, 0
        %1161 = vmatprep.subr.mxu0 0.0
        %1162 = vmatpush1.msra.mxu0 %v1094
        %1163 = vmatprep.subr.mxu0 0.0
        %1164 = vmatpush1.msra.mxu0 %v1097
        %1165 = vmatprep.subr.mxu0 0.0
        %1166 = vmatpush1.msra.mxu0 0.0
        %1167 = vmatprep.subr.mxu0 0.0
        %1168 = vmatpush1.msra.mxu0 0.0
        %1169 = vmatprep.subr.mxu0 0.0
        %1170 = vmatpush1.msra.mxu0 0.0
        %1171 = vmatprep.subr.mxu0 0.0
        %1172 = vmatpush1.msra.mxu0 0.0
        %1173 = vmatprep.subr.mxu0 0.0
        %1174 = vmatpush1.msra.mxu0 0.0
        %1175 = vmatprep.subr.mxu0 0.0
        %1176 = vmatpush1.msra.mxu0 0.0
        %1177 = vmatprep.subr.mxu0 0.0
        %1178 = vmatpush1.msra.mxu0 0.0
        %1179 = vmatprep.subr.mxu0 0.0
        %1180 = vmatpush1.msra.mxu0 0.0
        %1181 = vmatprep.subr.mxu0 0.0
        %1182 = vmatpush1.msra.mxu0 0.0
        %1183 = vmatprep.subr.mxu0 0.0
        %1184 = vmatpush1.msra.mxu0 0.0
        %1185 = vmatprep.subr.mxu0 0.0
        %1186 = vmatpush1.msra.mxu0 0.0
        %1187 = vmatprep.subr.mxu0 0.0
        %1188 = vmatpush1.msra.mxu0 0.0
        %1189 = vmatprep.subr.mxu0 0.0
        %1190 = vmatpush1.msra.mxu0 0.0
        %1191 = vmatprep.subr.mxu0 0.0
        %1192 = vmatpush1.msra.mxu0 0.0
        %1193 = vmatprep.subr.mxu0 0.0
        %1194 = vmatpush1.msra.mxu0 0.0
        %1195 = vmatprep.subr.mxu0 0.0
        %1196 = vmatpush1.msra.mxu0 0.0
        %1197 = vmatprep.subr.mxu0 0.0
        %1198 = vmatpush1.msra.mxu0 0.0
        %1199 = vmatprep.subr.mxu0 0.0
        %1200 = vmatpush1.msra.mxu0 0.0
        %1201 = vmatprep.subr.mxu0 0.0
        %1202 = vmatpush1.msra.mxu0 0.0
        %1203 = vmatprep.subr.mxu0 0.0
        %1204 = vmatpush1.msra.mxu0 0.0
        %1205 = vmatprep.subr.mxu0 0.0
        %1206 = vmatpush1.msra.mxu0 0.0
        %1207 = vmatprep.subr.mxu0 0.0
        %1208 = vmatpush1.msra.mxu0 0.0
        %1209 = vmatprep.subr.mxu0 0.0
        %1210 = vmatpush1.msra.mxu0 0.0
        %1211 = vmatprep.subr.mxu0 0.0
        %1212 = vmatpush1.msra.mxu0 0.0
        %1213 = vmatprep.subr.mxu0 0.0
        %1214 = vmatpush1.msra.mxu0 0.0
        %1215 = vmatprep.subr.mxu0 0.0
        %1216 = vmatpush1.msra.mxu0 0.0
        %1217 = vmatprep.subr.mxu0 0.0
        %1218 = vmatpush1.msra.mxu0 0.0
        %1219 = vmatprep.subr.mxu0 0.0
        %1220 = vmatpush1.msra.mxu0 0.0
        %1221 = vmatprep.subr.mxu0 0.0
        %1222 = vmatpush1.msra.mxu0 0.0
        %1223 = vmatprep.subr.mxu0 0.0
        %1224 = vmatpush1.msra.mxu0 0.0
        %1225 = vmatprep.mubr.f32.mxu0 0.0
        %1226 = vmatmul.mubr.f32.gmra.mrb[0].mxu0 %v1144
        %v1227 = vpop.f32.mrb[0].mxu0
        %v1228 = vadd.f32 %v1115, %v1227
        %v1229 = vpop.f32.mrb[0].mxu0
        %1230 = vmatprep.mubr.f32.mxu0 0.0
        %1231 = vmatmul.mubr.f32.gmra.mrb[0].mxu0 %v1147
        %v1232 = vpop.f32.mrb[0].mxu0
        %v1233 = vadd.f32 %v1120, %v1232
        %v1234 = vpop.f32.mrb[0].mxu0
        %1235 = vmatprep.mubr.f32.mxu0 0.0
        %1236 = vmatmul.mubr.f32.gmra.mrb[0].mxu0 %v1150
        %v1237 = vpop.f32.mrb[0].mxu0
        %v1238 = vadd.f32 %v1125, %v1237
        %v1239 = vpop.f32.mrb[0].mxu0
        %1240 = vmatprep.mubr.f32.mxu0 0.0
        %1241 = vmatmul.mubr.f32.gmra.mrb[0].mxu0 %v1153
        %v1242 = vpop.f32.mrb[0].mxu0
        %v1243 = vadd.f32 %v1130, %v1242
        %v1244 = vpop.f32.mrb[0].mxu0
        %1245 = vmatprep.mubr.f32.mxu0 0.0
        %1246 = vmatmul.mubr.f32.gmra.mrb[0].mxu0 %v1156
        %v1247 = vpop.f32.mrb[0].mxu0
        %v1248 = vadd.f32 %v1135, %v1247
        %v1249 = vpop.f32.mrb[0].mxu0
        %1250 = vmatprep.mubr.f32.mxu0 0.0
        %1251 = vmatmul.mubr.f32.gmra.mrb[0].mxu0 %v1159
        %v1252 = vpop.f32.mrb[0].mxu0
        %v1253 = vadd.f32 %v1140, %v1252
        %v1254 = vpop.f32.mrb[0].mxu0
        %1255 = vdwg.mxu0
        %v1256 = vld [vmem:[%s12] sm:$0xff]
        %v1257 = vld [vmem:[%s12 + $0x8] sm:$0xff]
        %v1258 = vld [vmem:[%s12 + $0x10] sm:$0xff]
        %v1259 = vld [vmem:[%s12 + $0x18] sm:$0xff]
        %v1260 = vld [vmem:[%s12 + $0x20] sm:$0xff]
        %v1261 = vld [vmem:[%s12 + $0x28] sm:$0xff]
        %v1262 = vld [vmem:[%s14] sm:$0xff]
        %v1263 = vld [vmem:[%s14 + $0x8] sm:$0xff]
        %v1264 = vld [vmem:[%s14 + $0x10] sm:$0xff]
        %v1265 = vld [vmem:[%s14 + $0x18] sm:$0xff]
        %v1266 = vld [vmem:[%s14 + $0x20] sm:$0xff]
        %v1267 = vld [vmem:[%s14 + $0x28] sm:$0xff]
        %1269 = vset.pattern.permute.xlu0 0
        %1270 = vperm.xlu0 %1269, %v1262
        %v1271 = vpop.permute.xlu0 %1270
        %1274 = vset.pattern.permute.xlu0 0
        %1275 = vperm.xlu0 %1274, %v1263
        %v1276 = vpop.permute.xlu0 %1275
        %1279 = vset.pattern.permute.xlu0 0
        %1280 = vperm.xlu0 %1279, %v1264
        %v1281 = vpop.permute.xlu0 %1280
        %1284 = vset.pattern.permute.xlu0 0
        %1285 = vperm.xlu0 %1284, %v1265
        %v1286 = vpop.permute.xlu0 %1285
        %1289 = vset.pattern.permute.xlu0 0
        %1290 = vperm.xlu0 %1289, %v1266
        %v1291 = vpop.permute.xlu0 %1290
        %1294 = vset.pattern.permute.xlu0 0
        %1295 = vperm.xlu0 %1294, %v1267
        %v1296 = vpop.permute.xlu0 %1295
        %v1299 = vsel %vm1142, %v1256, 0
        %v1302 = vsel %vm1142, %v1257, 0
        %v1305 = vsel %vm1142, %v1258, 0
        %v1308 = vsel %vm1142, %v1259, 0
        %v1311 = vsel %vm1142, %v1260, 0
        %v1314 = vsel %vm1142, %v1261, 0
        %1316 = vmatprep.subr.mxu0 0.0
        %1317 = vmatpush1.msra.mxu0 %v661
        %1318 = vmatprep.subr.mxu0 0.0
        %1319 = vmatpush1.msra.mxu0 %v662
        %1320 = vmatprep.subr.mxu0 0.0
        %1321 = vmatpush1.msra.mxu0 0.0
        %1322 = vmatprep.subr.mxu0 0.0
        %1323 = vmatpush1.msra.mxu0 0.0
        %1324 = vmatprep.subr.mxu0 0.0
        %1325 = vmatpush1.msra.mxu0 0.0
        %1326 = vmatprep.subr.mxu0 0.0
        %1327 = vmatpush1.msra.mxu0 0.0
        %1328 = vmatprep.subr.mxu0 0.0
        %1329 = vmatpush1.msra.mxu0 0.0
        %1330 = vmatprep.subr.mxu0 0.0
        %1331 = vmatpush1.msra.mxu0 0.0
        %1332 = vmatprep.subr.mxu0 0.0
        %1333 = vmatpush1.msra.mxu0 0.0
        %1334 = vmatprep.subr.mxu0 0.0
        %1335 = vmatpush1.msra.mxu0 0.0
        %1336 = vmatprep.subr.mxu0 0.0
        %1337 = vmatpush1.msra.mxu0 0.0
        %1338 = vmatprep.subr.mxu0 0.0
        %1339 = vmatpush1.msra.mxu0 0.0
        %1340 = vmatprep.subr.mxu0 0.0
        %1341 = vmatpush1.msra.mxu0 0.0
        %1342 = vmatprep.subr.mxu0 0.0
        %1343 = vmatpush1.msra.mxu0 0.0
        %1344 = vmatprep.subr.mxu0 0.0
        %1345 = vmatpush1.msra.mxu0 0.0
        %1346 = vmatprep.subr.mxu0 0.0
        %1347 = vmatpush1.msra.mxu0 0.0
        %1348 = vmatprep.subr.mxu0 0.0
        %1349 = vmatpush1.msra.mxu0 0.0
        %1350 = vmatprep.subr.mxu0 0.0
        %1351 = vmatpush1.msra.mxu0 0.0
        %1352 = vmatprep.subr.mxu0 0.0
        %1353 = vmatpush1.msra.mxu0 0.0
        %1354 = vmatprep.subr.mxu0 0.0
        %1355 = vmatpush1.msra.mxu0 0.0
        %1356 = vmatprep.subr.mxu0 0.0
        %1357 = vmatpush1.msra.mxu0 0.0
        %1358 = vmatprep.subr.mxu0 0.0
        %1359 = vmatpush1.msra.mxu0 0.0
        %1360 = vmatprep.subr.mxu0 0.0
        %1361 = vmatpush1.msra.mxu0 0.0
        %1362 = vmatprep.subr.mxu0 0.0
        %1363 = vmatpush1.msra.mxu0 0.0
        %1364 = vmatprep.subr.mxu0 0.0
        %1365 = vmatpush1.msra.mxu0 0.0
        %1366 = vmatprep.subr.mxu0 0.0
        %1367 = vmatpush1.msra.mxu0 0.0
        %1368 = vmatprep.subr.mxu0 0.0
        %1369 = vmatpush1.msra.mxu0 0.0
        %1370 = vmatprep.subr.mxu0 0.0
        %1371 = vmatpush1.msra.mxu0 0.0
        %1372 = vmatprep.subr.mxu0 0.0
        %1373 = vmatpush1.msra.mxu0 0.0
        %1374 = vmatprep.subr.mxu0 0.0
        %1375 = vmatpush1.msra.mxu0 0.0
        %1376 = vmatprep.subr.mxu0 0.0
        %1377 = vmatpush1.msra.mxu0 0.0
        %1378 = vmatprep.subr.mxu0 0.0
        %1379 = vmatpush1.msra.mxu0 0.0
        %1380 = vmatprep.mubr.f32.mxu0 0.0
        %1381 = vmatmul.mubr.f32.gmra.mrb[0].mxu0 %v1299
        %v1382 = vpop.f32.mrb[0].mxu0
        %v1383 = vadd.f32 %v1271, %v1382
        %v1384 = vpop.f32.mrb[0].mxu0
        %1385 = vmatprep.mubr.f32.mxu0 0.0
        %1386 = vmatmul.mubr.f32.gmra.mrb[0].mxu0 %v1302
        %v1387 = vpop.f32.mrb[0].mxu0
        %v1388 = vadd.f32 %v1276, %v1387
        %v1389 = vpop.f32.mrb[0].mxu0
        %1390 = vmatprep.mubr.f32.mxu0 0.0
        %1391 = vmatmul.mubr.f32.gmra.mrb[0].mxu0 %v1305
        %v1392 = vpop.f32.mrb[0].mxu0
        %v1393 = vadd.f32 %v1281, %v1392
        %v1394 = vpop.f32.mrb[0].mxu0
        %1395 = vmatprep.mubr.f32.mxu0 0.0
        %1396 = vmatmul.mubr.f32.gmra.mrb[0].mxu0 %v1308
        %v1397 = vpop.f32.mrb[0].mxu0
        %v1398 = vadd.f32 %v1286, %v1397
        %v1399 = vpop.f32.mrb[0].mxu0
        %1400 = vmatprep.mubr.f32.mxu0 0.0
        %1401 = vmatmul.mubr.f32.gmra.mrb[0].mxu0 %v1311
        %v1402 = vpop.f32.mrb[0].mxu0
        %v1403 = vadd.f32 %v1291, %v1402
        %v1404 = vpop.f32.mrb[0].mxu0
        %1405 = vmatprep.mubr.f32.mxu0 0.0
        %1406 = vmatmul.mubr.f32.gmra.mrb[0].mxu0 %v1314
        %v1407 = vpop.f32.mrb[0].mxu0
        %v1408 = vadd.f32 %v1296, %v1407
        %v1409 = vpop.f32.mrb[0].mxu0
        %1410 = vdwg.mxu0
        %v1411 = vadd.f32 %v1228, %v1383
        %v1412 = vadd.f32 %v1233, %v1388
        %v1413 = vxor.u32 %v1411, 2147483648
        %v1414 = vxor.u32 %v1412, 2147483648
        %v1415 = vmul.f32 %v1413, 1.442695
        %v1416 = vpow.pop %v1415
        %v1417 = vmul.f32 %v1414, 1.442695
        %v1418 = vpow.pop %v1417
        %v1419 = vadd.f32 %v1416, 1.0
        %v1420 = vadd.f32 %v1418, 1.0
        %v1421 = vrcp.pop %v1419
        %v1422 = vmul.f32 1.0, %v1421
        %v1423 = vrcp.pop %v1420
        %v1424 = vmul.f32 1.0, %v1423
        %v1425 = vadd.f32 %v1238, %v1393
        %v1426 = vadd.f32 %v1243, %v1398
        %v1427 = vxor.u32 %v1425, 2147483648
        %v1428 = vxor.u32 %v1426, 2147483648
        %v1429 = vmul.f32 %v1427, 1.442695
        %v1430 = vpow.pop %v1429
        %v1431 = vmul.f32 %v1428, 1.442695
        %v1432 = vpow.pop %v1431
        %v1433 = vadd.f32 %v1430, 1.0
        %v1434 = vadd.f32 %v1432, 1.0
        %v1435 = vrcp.pop %v1433
        %v1436 = vmul.f32 1.0, %v1435
        %v1437 = vrcp.pop %v1434
        %v1438 = vmul.f32 1.0, %v1437
        %v1439 = vmul.f32 %v1422, %v1403
        %v1440 = vmul.f32 %v1424, %v1408
        %v1441 = vadd.f32 %v1248, %v1439
        %v1442 = vadd.f32 %v1253, %v1440
        %v1443 = vtanh.pop %v1441
        %v1444 = vtanh.pop %v1442
        %v1445 = vsub.f32 1.0, %v1436
        %v1446 = vsub.f32 1.0, %v1438
        %v1447 = vmul.f32 %v1445, %v1443
        %v1448 = vmul.f32 %v1446, %v1444
        %v1449 = vmul.f32 %v1436, %v661
        %v1450 = vmul.f32 %v1438, %v662
        %v1451 = vadd.f32 %v1447, %v1449
        %v1452 = vadd.f32 %v1448, %v1450
        %1453 = vst [vmem:[#allocation2] sm:$0xff] %v1451
        %1454 = vst [vmem:[#allocation2 + $0x8] sm:$0xff] %v1452
        %1455 = vst [vmem:[%s497] sm:$0x1] %v991
        %s1456 = sand.u32 %s376, 1
        %s1457 = scalar_lea.sflag [#allocation5], %s1456
        %s1458 = sand.u32 %s376, 1
        %s1459 = scalar_lea.vmem [#allocation4], %s1458
        // Predicated region
        $region85: #{tpu_custom_call.1} parent=79 // pred_check
          %p1460 = pneg %p360
        $region86: #{tpu_custom_call.1} parent=79 // pred_check_branch
          %1462 = sbr.rel (%p1460) target = $region88
        $region87: #{tpu_custom_call.1} parent=79 // pred_region
          %s1464 = ssub.s32 256, 256
          %1465 = vsyncadd [#allocation3], %s1464
          %s1466 = sshll.u32 [#allocation2], 4
          %s1467 = int_to_ptr.vmem [resolvable:$true] %s1466
          %1472 = dma.vmem_to_hbm [thread:$0]  %s1467, 256, %s15, [#allocation3], 128, 128, 8
        $region88: #{tpu_custom_call.1} parent=79 // pred_fallthru
          _
        // Predicated region
        $region89: #{tpu_custom_call.1} parent=79 // pred_check
          %p1473 = pneg %p386
        $region90: #{tpu_custom_call.1} parent=79 // pred_check_branch
          %1475 = sbr.rel (%p1473) target = $region92
        $region91: #{tpu_custom_call.1} parent=79 // pred_region
          %s1477 = ssub.s32 16, 16
          %1478 = vsyncadd %s1457, %s1477
          %s1479 = smul.addr %s32, 16
          %s1480 = scalar_lea.hbm %s16, %s1479
          %s1482 = sshll.u32 %s1459, 4
          %s1483 = int_to_ptr.vmem [resolvable:$true] %s1482
          %1485 = dma.vmem_to_hbm [thread:$0]  %s1483, 16, %s1480, %s1457
        $region92: #{tpu_custom_call.1} parent=79 // pred_fallthru
          _
        // Predicated region
        $region93: #{tpu_custom_call.1} parent=79 // pred_check
          %p1486 = pneg %p360
        $region94: #{tpu_custom_call.1} parent=79 // pred_check_branch
          %1488 = sbr.rel (%p1486) target = $region96
        $region95: #{tpu_custom_call.1} parent=79 // pred_region
          %1489 = dma.done [#allocation3], 256
        $region96: #{tpu_custom_call.1} parent=79 // pred_fallthru
          _
      $region80: #{tpu_custom_call.1} parent=5 // pred_fallthru
        _
      %p1490 = scmp.le.s32.totalorder 2, %s27
      // Predicated region
      $region97: #{tpu_custom_call.1} parent=5 // pred_check
        %p1491 = pneg %p1490
      $region98: #{tpu_custom_call.1} parent=5 // pred_check_branch
        %1493 = sbr.rel (%p1491) target = $region100
      $region99: #{tpu_custom_call.1} parent=5 // pred_region
        %s1494 = ssub.s32 %s27, 2
        // Predicated region
        $region101: #{tpu_custom_call.1} parent=99 // pred_check
          %p1495 = pneg %p392
        $region102: #{tpu_custom_call.1} parent=99 // pred_check_branch
          %1497 = sbr.rel (%p1495) target = $region104
        $region103: #{tpu_custom_call.1} parent=99 // pred_region
          %s1498 = sand.u32 %s377, 1
          %s1499 = scalar_lea.sflag [#allocation5], %s1498
          %s1500 = sand.u32 %s377, 1
          %s1501 = scalar_lea.vmem [#allocation4], %s1500
          %1502 = dma.done %s1499, 16
        $region104: #{tpu_custom_call.1} parent=99 // pred_fallthru
          _
      $region100: #{tpu_custom_call.1} parent=5 // pred_fallthru
        _
    $region6: #{tpu_custom_call.1} parent=1 // loop_footer
      %s31 = sadd.s32 1, %s27
    $region7: #{tpu_custom_call.1} parent=1 // loop_footer_branch
      %26 = sbr.rel target = $region3
    $region8: #{tpu_custom_call.1} parent=1 // loop_exit
      _
    %1503 = vsyncpa [#allocation3], 1
    %s1504 = scalar_lea.sflag [#allocation3], 1
    %1505 = vsyncpa %s1504, 1
    %1506 = vsyncpa [#allocation5], 1
    %s1507 = scalar_lea.sflag [#allocation5], 1
    %1508 = vsyncpa %s1507, 1

</llo_original>
